<compile_context>
chip_gen: v5e
topology: v5e:2x2
jax: 0.10.0
libtpu: 0.0.40
codegen_flags: <defaults>
</compile_context>

<pallas_src>
import functools

import jax
import jax.numpy as jnp
from jax.experimental import pallas as pl
from jax.experimental.pallas import tpu as pltpu


def _conv_relu_kernel(x_ref, w_ref, o_ref, xpad_ref, slab_ref, *,
                      n, c_in, c_pad, h, w, kh, kw, wp, m, pad):
    """Whole batch in one step: pad -> im2col slab -> one matmul -> ReLU.

    x_ref:    (N, C_in, H*W)       raw images, rows flattened (free reshape)
    w_ref:    (C_out, KH*KW*C_pad) flattened weight (zero cols for pad chans)
    o_ref:    (N, C_out, M)        M = ceil(Hp*Wp/128)*128 over-computed cols
    xpad_ref: VMEM (N, C_pad, Lin) zero-padded flat images + guard zeros
    slab_ref: VMEM (KH*KW*C_pad, N*M) im2col slab
    """
    # 1) In-kernel halo + channel padding: zero once, copy only interior rows.
    xpad_ref[...] = jnp.zeros_like(xpad_ref)
    for b in range(n):
        for i in range(h):
            dst = (i + pad) * wp + pad
            xpad_ref[b, :c_in, dst:dst + w] = x_ref[b, :, i * w:(i + 1) * w]

    # 2) im2col: KH*KW shifted lane slices per image.  Destination blocks are
    #    8-sublane-aligned (r0 multiple of c_pad=8) and 128-lane-aligned
    #    (b*m multiple of 128, width m multiple of 128) -> unmasked stores.
    for b in range(n):
        for ih in range(kh):
            for iw in range(kw):
                off = ih * wp + iw
                r0 = (ih * kw + iw) * c_pad
                slab_ref[r0:r0 + c_pad, b * m:(b + 1) * m] = \
                    xpad_ref[b, :, off:off + m]

    # 3) Single fused contraction, K = KH*KW*C_pad, lane axis = N*M, + ReLU.
    #    (Keep (C_out,K) x (K,N*M) orientation: output lane axis stays dense.)
    acc = jnp.dot(w_ref[...], slab_ref[...], preferred_element_type=jnp.float32)
    acc = jnp.maximum(acc, 0.0)
    for b in range(n):
        o_ref[b] = acc[:, b * m:(b + 1) * m].astype(o_ref.dtype)


def prepare_weight(weight_oihw, c_pad):
    """OIHW -> (C_out, KH*KW*C_pad); column index = (kh*KW + kw)*C_pad + c.

    Called once per model (hoisted out of the per-call path)."""
    c_out, c_in, kh, kw = weight_oihw.shape
    wpad = jnp.pad(weight_oihw, ((0, 0), (0, c_pad - c_in), (0, 0), (0, 0)))
    return jnp.transpose(wpad, (0, 2, 3, 1)).reshape(c_out, kh * kw * c_pad)


def basic_conv2d(x_nchw, w_flat, *, kh, kw, padding=1, stride=1):
    """Conv2d(bias=False, stride=1) + ReLU; NCHW in / NCHW out (PyTorch)."""
    assert stride == 1, "this BasicConv2d config uses stride=1"
    n, c_in, h, w = x_nchw.shape
    c_out, k = w_flat.shape
    c_pad = k // (kh * kw)

    hp, wp = h + 2 * padding, w + 2 * padding
    ho, wo = hp - kh + 1, wp - kw + 1        # conv output size (== H, W here)
    hpwp = hp * wp
    m = -(-hpwp // 128) * 128                # lane axis rounded to 128 (384)
    off_max = (kh - 1) * wp + (kw - 1)       # largest tap shift in flat layout
    lin = off_max + m                        # flat padded length incl. guards

    x_flat = x_nchw.reshape(n, c_in, h * w)  # free reshape, no HBM pass

    kernel = functools.partial(
        _conv_relu_kernel, n=n, c_in=c_in, c_pad=c_pad, h=h, w=w,
        kh=kh, kw=kw, wp=wp, m=m, pad=padding)

    out_flat = pl.pallas_call(
        kernel,
        out_shape=jax.ShapeDtypeStruct((n, c_out, m), x_nchw.dtype),
        grid_spec=pltpu.PrefetchScalarGridSpec(
            num_scalar_prefetch=0,
            grid=(1,),                       # whole batch fused in one step
            in_specs=[
                pl.BlockSpec((n, c_in, h * w), lambda i: (0, 0, 0)),
                pl.BlockSpec((c_out, k), lambda i: (0, 0)),
            ],
            out_specs=pl.BlockSpec((n, c_out, m), lambda i: (0, 0, 0)),
            scratch_shapes=[
                pltpu.VMEM((n, c_pad, lin), jnp.float32),      # padded images
                pltpu.VMEM((k, n * m), jnp.float32),           # im2col slab
            ],
        ),
        compiler_params=pltpu.CompilerParams(
            dimension_semantics=("arbitrary",)),
    )(x_flat, w_flat)

    # Crop over-computed columns + halo; layout is already NCHW (no transpose).
    # TODO(synk): fuse this crop into the consumer op in a full network.
    return out_flat[:, :, :hpwp].reshape(n, c_out, hp, wp)[:, :, :ho, :wo]


if __name__ == "__main__":
    key = jax.random.PRNGKey(0)
    kx, kw_ = jax.random.split(key)

    N, C_in, H, W = 2, 4, 16, 16
    C_out, KH, KW = 8, 3, 3

    x = jax.random.normal(kx, (N, C_in, H, W), dtype=jnp.float32)
    # Deterministic Conv2d weight (OIHW), no bias (matches nn.Conv2d(bias=False)).
    weight = jax.random.normal(kw_, (C_out, C_in, KH, KW), dtype=jnp.float32) * 0.1

    # One-time weight prep (hoisted out of the per-call path).
    C_pad = -(-C_in // 8) * 8
    w_flat = prepare_weight(weight, C_pad)

    conv = jax.jit(functools.partial(basic_conv2d, kh=KH, kw=KW, padding=1))
    out = conv(x, w_flat)
    out = jax.block_until_ready(out)

    # Reference: lax conv (same NCHW/OIHW cross-correlation semantics as PyTorch) + ReLU.
    ref = jax.lax.conv_general_dilated(
        x, weight, window_strides=(1, 1), padding=((1, 1), (1, 1)),
        dimension_numbers=("NCHW", "OIHW", "NCHW"))
    ref = jnp.maximum(ref, 0.0)

    assert out.shape == (N, C_out, H, W)
    assert jnp.allclose(out, ref, atol=1e-4, rtol=1e-4), \
        float(jnp.max(jnp.abs(out - ref)))

    print("KERNEL_OK")
</pallas_src>

<mosaic_0001>
module attributes {stable_mosaic.version = 11 : i64} {
  func.func @_conv_relu_kernel(%arg0: i32, %arg1: memref<2x4x256xf32, #tpu.memory_space<vmem>>, %arg2: memref<8x72xf32, #tpu.memory_space<vmem>>, %arg3: memref<2x8x384xf32, #tpu.memory_space<vmem>>, %arg4: memref<2x8x422xf32, #tpu.memory_space<vmem>>, %arg5: memref<72x768xf32, #tpu.memory_space<vmem>>) attributes {dimension_semantics = [#tpu.dimension_semantics<arbitrary>], iteration_bounds = array<i64: 1>, scalar_prefetch = 0 : i64, scratch_operands = 2 : i64, tpu.core_type = #tpu.core_type<tc>, window_params = [{pipeline_mode = #tpu.pipeline_mode<synchronous>, transform_indices = @transform_0, window_bounds = array<i64: 2, 4, 256>}, {pipeline_mode = #tpu.pipeline_mode<synchronous>, transform_indices = @transform_1, window_bounds = array<i64: 8, 72>}, {pipeline_mode = #tpu.pipeline_mode<synchronous>, transform_indices = @transform_2, window_bounds = array<i64: 2, 8, 384>}]} {
    %cst = arith.constant 0.000000e+00 : f32
    %0 = vector.broadcast %cst : f32 to vector<2x8x422xf32>
    %c0 = arith.constant 0 : index
    %c0_0 = arith.constant 0 : index
    %c0_1 = arith.constant 0 : index
    %1 = vector.load %arg4[%c0, %c0_0, %c0_1] : memref<2x8x422xf32, #tpu.memory_space<vmem>>, vector<2x8x422xf32>
    tpu.vector_store %arg4[%c0, %c0_0, %c0_1], %0 {strides = array<i32>} : memref<2x8x422xf32, #tpu.memory_space<vmem>>, vector<2x8x422xf32>,
    %c0_2 = arith.constant 0 : index
    %c0_3 = arith.constant 0 : index
    %c0_4 = arith.constant 0 : index
    %2 = vector.load %arg1[%c0_2, %c0_3, %c0_4] : memref<2x4x256xf32, #tpu.memory_space<vmem>>, vector<1x4x16xf32>
    %3 = vector.shape_cast %2 : vector<1x4x16xf32> to vector<4x16xf32>
    %c0_5 = arith.constant 0 : index
    %c0_6 = arith.constant 0 : index
    %c19 = arith.constant 19 : index
    %4 = vector.load %arg4[%c0_5, %c0_6, %c19] : memref<2x8x422xf32, #tpu.memory_space<vmem>>, vector<1x4x16xf32>
    %5 = vector.shape_cast %4 : vector<1x4x16xf32> to vector<4x16xf32>
    %6 = vector.shape_cast %3 : vector<4x16xf32> to vector<1x4x16xf32>
    tpu.vector_store %arg4[%c0_5, %c0_6, %c19], %6 {strides = array<i32>} : memref<2x8x422xf32, #tpu.memory_space<vmem>>, vector<1x4x16xf32>,
    %c0_7 = arith.constant 0 : index
    %c0_8 = arith.constant 0 : index
    %c16 = arith.constant 16 : index
    %7 = vector.load %arg1[%c0_7, %c0_8, %c16] : memref<2x4x256xf32, #tpu.memory_space<vmem>>, vector<1x4x16xf32>
    %8 = vector.shape_cast %7 : vector<1x4x16xf32> to vector<4x16xf32>
    %c0_9 = arith.constant 0 : index
    %c0_10 = arith.constant 0 : index
    %c37 = arith.constant 37 : index
    %9 = vector.load %arg4[%c0_9, %c0_10, %c37] : memref<2x8x422xf32, #tpu.memory_space<vmem>>, vector<1x4x16xf32>
    %10 = vector.shape_cast %9 : vector<1x4x16xf32> to vector<4x16xf32>
    %11 = vector.shape_cast %8 : vector<4x16xf32> to vector<1x4x16xf32>
    tpu.vector_store %arg4[%c0_9, %c0_10, %c37], %11 {strides = array<i32>} : memref<2x8x422xf32, #tpu.memory_space<vmem>>, vector<1x4x16xf32>,
    %c0_11 = arith.constant 0 : index
    %c0_12 = arith.constant 0 : index
    %c32 = arith.constant 32 : index
    %12 = vector.load %arg1[%c0_11, %c0_12, %c32] : memref<2x4x256xf32, #tpu.memory_space<vmem>>, vector<1x4x16xf32>
    %13 = vector.shape_cast %12 : vector<1x4x16xf32> to vector<4x16xf32>
    %c0_13 = arith.constant 0 : index
    %c0_14 = arith.constant 0 : index
    %c55 = arith.constant 55 : index
    %14 = vector.load %arg4[%c0_13, %c0_14, %c55] : memref<2x8x422xf32, #tpu.memory_space<vmem>>, vector<1x4x16xf32>
    %15 = vector.shape_cast %14 : vector<1x4x16xf32> to vector<4x16xf32>
    %16 = vector.shape_cast %13 : vector<4x16xf32> to vector<1x4x16xf32>
    tpu.vector_store %arg4[%c0_13, %c0_14, %c55], %16 {strides = array<i32>} : memref<2x8x422xf32, #tpu.memory_space<vmem>>, vector<1x4x16xf32>,
    %c0_15 = arith.constant 0 : index
    %c0_16 = arith.constant 0 : index
    %c48 = arith.constant 48 : index
    %17 = vector.load %arg1[%c0_15, %c0_16, %c48] : memref<2x4x256xf32, #tpu.memory_space<vmem>>, vector<1x4x16xf32>
    %18 = vector.shape_cast %17 : vector<1x4x16xf32> to vector<4x16xf32>
    %c0_17 = arith.constant 0 : index
    %c0_18 = arith.constant 0 : index
    %c73 = arith.constant 73 : index
    %19 = vector.load %arg4[%c0_17, %c0_18, %c73] : memref<2x8x422xf32, #tpu.memory_space<vmem>>, vector<1x4x16xf32>
    %20 = vector.shape_cast %19 : vector<1x4x16xf32> to vector<4x16xf32>
    %21 = vector.shape_cast %18 : vector<4x16xf32> to vector<1x4x16xf32>
    tpu.vector_store %arg4[%c0_17, %c0_18, %c73], %21 {strides = array<i32>} : memref<2x8x422xf32, #tpu.memory_space<vmem>>, vector<1x4x16xf32>,
    %c0_19 = arith.constant 0 : index
    %c0_20 = arith.constant 0 : index
    %c64 = arith.constant 64 : index
    %22 = vector.load %arg1[%c0_19, %c0_20, %c64] : memref<2x4x256xf32, #tpu.memory_space<vmem>>, vector<1x4x16xf32>
    %23 = vector.shape_cast %22 : vector<1x4x16xf32> to vector<4x16xf32>
    %c0_21 = arith.constant 0 : index
    %c0_22 = arith.constant 0 : index
    %c91 = arith.constant 91 : index
    %24 = vector.load %arg4[%c0_21, %c0_22, %c91] : memref<2x8x422xf32, #tpu.memory_space<vmem>>, vector<1x4x16xf32>
    %25 = vector.shape_cast %24 : vector<1x4x16xf32> to vector<4x16xf32>
    %26 = vector.shape_cast %23 : vector<4x16xf32> to vector<1x4x16xf32>
    tpu.vector_store %arg4[%c0_21, %c0_22, %c91], %26 {strides = array<i32>} : memref<2x8x422xf32, #tpu.memory_space<vmem>>, vector<1x4x16xf32>,
    %c0_23 = arith.constant 0 : index
    %c0_24 = arith.constant 0 : index
    %c80 = arith.constant 80 : index
    %27 = vector.load %arg1[%c0_23, %c0_24, %c80] : memref<2x4x256xf32, #tpu.memory_space<vmem>>, vector<1x4x16xf32>
    %28 = vector.shape_cast %27 : vector<1x4x16xf32> to vector<4x16xf32>
    %c0_25 = arith.constant 0 : index
    %c0_26 = arith.constant 0 : index
    %c109 = arith.constant 109 : index
    %29 = vector.load %arg4[%c0_25, %c0_26, %c109] : memref<2x8x422xf32, #tpu.memory_space<vmem>>, vector<1x4x16xf32>
    %30 = vector.shape_cast %29 : vector<1x4x16xf32> to vector<4x16xf32>
    %31 = vector.shape_cast %28 : vector<4x16xf32> to vector<1x4x16xf32>
    tpu.vector_store %arg4[%c0_25, %c0_26, %c109], %31 {strides = array<i32>} : memref<2x8x422xf32, #tpu.memory_space<vmem>>, vector<1x4x16xf32>,
    %c0_27 = arith.constant 0 : index
    %c0_28 = arith.constant 0 : index
    %c96 = arith.constant 96 : index
    %32 = vector.load %arg1[%c0_27, %c0_28, %c96] : memref<2x4x256xf32, #tpu.memory_space<vmem>>, vector<1x4x16xf32>
    %33 = vector.shape_cast %32 : vector<1x4x16xf32> to vector<4x16xf32>
    %c0_29 = arith.constant 0 : index
    %c0_30 = arith.constant 0 : index
    %c127 = arith.constant 127 : index
    %34 = vector.load %arg4[%c0_29, %c0_30, %c127] : memref<2x8x422xf32, #tpu.memory_space<vmem>>, vector<1x4x16xf32>
    %35 = vector.shape_cast %34 : vector<1x4x16xf32> to vector<4x16xf32>
    %36 = vector.shape_cast %33 : vector<4x16xf32> to vector<1x4x16xf32>
    tpu.vector_store %arg4[%c0_29, %c0_30, %c127], %36 {strides = array<i32>} : memref<2x8x422xf32, #tpu.memory_space<vmem>>, vector<1x4x16xf32>,
    %c0_31 = arith.constant 0 : index
    %c0_32 = arith.constant 0 : index
    %c112 = arith.constant 112 : index
    %37 = vector.load %arg1[%c0_31, %c0_32, %c112] : memref<2x4x256xf32, #tpu.memory_space<vmem>>, vector<1x4x16xf32>
    %38 = vector.shape_cast %37 : vector<1x4x16xf32> to vector<4x16xf32>
    %c0_33 = arith.constant 0 : index
    %c0_34 = arith.constant 0 : index
    %c145 = arith.constant 145 : index
    %39 = vector.load %arg4[%c0_33, %c0_34, %c145] : memref<2x8x422xf32, #tpu.memory_space<vmem>>, vector<1x4x16xf32>
    %40 = vector.shape_cast %39 : vector<1x4x16xf32> to vector<4x16xf32>
    %41 = vector.shape_cast %38 : vector<4x16xf32> to vector<1x4x16xf32>
    tpu.vector_store %arg4[%c0_33, %c0_34, %c145], %41 {strides = array<i32>} : memref<2x8x422xf32, #tpu.memory_space<vmem>>, vector<1x4x16xf32>,
    %c0_35 = arith.constant 0 : index
    %c0_36 = arith.constant 0 : index
    %c128 = arith.constant 128 : index
    %42 = vector.load %arg1[%c0_35, %c0_36, %c128] : memref<2x4x256xf32, #tpu.memory_space<vmem>>, vector<1x4x16xf32>
    %43 = vector.shape_cast %42 : vector<1x4x16xf32> to vector<4x16xf32>
    %c0_37 = arith.constant 0 : index
    %c0_38 = arith.constant 0 : index
    %c163 = arith.constant 163 : index
    %44 = vector.load %arg4[%c0_37, %c0_38, %c163] : memref<2x8x422xf32, #tpu.memory_space<vmem>>, vector<1x4x16xf32>
    %45 = vector.shape_cast %44 : vector<1x4x16xf32> to vector<4x16xf32>
    %46 = vector.shape_cast %43 : vector<4x16xf32> to vector<1x4x16xf32>
    tpu.vector_store %arg4[%c0_37, %c0_38, %c163], %46 {strides = array<i32>} : memref<2x8x422xf32, #tpu.memory_space<vmem>>, vector<1x4x16xf32>,
    %c0_39 = arith.constant 0 : index
    %c0_40 = arith.constant 0 : index
    %c144 = arith.constant 144 : index
    %47 = vector.load %arg1[%c0_39, %c0_40, %c144] : memref<2x4x256xf32, #tpu.memory_space<vmem>>, vector<1x4x16xf32>
    %48 = vector.shape_cast %47 : vector<1x4x16xf32> to vector<4x16xf32>
    %c0_41 = arith.constant 0 : index
    %c0_42 = arith.constant 0 : index
    %c181 = arith.constant 181 : index
    %49 = vector.load %arg4[%c0_41, %c0_42, %c181] : memref<2x8x422xf32, #tpu.memory_space<vmem>>, vector<1x4x16xf32>
    %50 = vector.shape_cast %49 : vector<1x4x16xf32> to vector<4x16xf32>
    %51 = vector.shape_cast %48 : vector<4x16xf32> to vector<1x4x16xf32>
    tpu.vector_store %arg4[%c0_41, %c0_42, %c181], %51 {strides = array<i32>} : memref<2x8x422xf32, #tpu.memory_space<vmem>>, vector<1x4x16xf32>,
    %c0_43 = arith.constant 0 : index
    %c0_44 = arith.constant 0 : index
    %c160 = arith.constant 160 : index
    %52 = vector.load %arg1[%c0_43, %c0_44, %c160] : memref<2x4x256xf32, #tpu.memory_space<vmem>>, vector<1x4x16xf32>
    %53 = vector.shape_cast %52 : vector<1x4x16xf32> to vector<4x16xf32>
    %c0_45 = arith.constant 0 : index
    %c0_46 = arith.constant 0 : index
    %c199 = arith.constant 199 : index
    %54 = vector.load %arg4[%c0_45, %c0_46, %c199] : memref<2x8x422xf32, #tpu.memory_space<vmem>>, vector<1x4x16xf32>
    %55 = vector.shape_cast %54 : vector<1x4x16xf32> to vector<4x16xf32>
    %56 = vector.shape_cast %53 : vector<4x16xf32> to vector<1x4x16xf32>
    tpu.vector_store %arg4[%c0_45, %c0_46, %c199], %56 {strides = array<i32>} : memref<2x8x422xf32, #tpu.memory_space<vmem>>, vector<1x4x16xf32>,
    %c0_47 = arith.constant 0 : index
    %c0_48 = arith.constant 0 : index
    %c176 = arith.constant 176 : index
    %57 = vector.load %arg1[%c0_47, %c0_48, %c176] : memref<2x4x256xf32, #tpu.memory_space<vmem>>, vector<1x4x16xf32>
    %58 = vector.shape_cast %57 : vector<1x4x16xf32> to vector<4x16xf32>
    %c0_49 = arith.constant 0 : index
    %c0_50 = arith.constant 0 : index
    %c217 = arith.constant 217 : index
    %59 = vector.load %arg4[%c0_49, %c0_50, %c217] : memref<2x8x422xf32, #tpu.memory_space<vmem>>, vector<1x4x16xf32>
    %60 = vector.shape_cast %59 : vector<1x4x16xf32> to vector<4x16xf32>
    %61 = vector.shape_cast %58 : vector<4x16xf32> to vector<1x4x16xf32>
    tpu.vector_store %arg4[%c0_49, %c0_50, %c217], %61 {strides = array<i32>} : memref<2x8x422xf32, #tpu.memory_space<vmem>>, vector<1x4x16xf32>,
    %c0_51 = arith.constant 0 : index
    %c0_52 = arith.constant 0 : index
    %c192 = arith.constant 192 : index
    %62 = vector.load %arg1[%c0_51, %c0_52, %c192] : memref<2x4x256xf32, #tpu.memory_space<vmem>>, vector<1x4x16xf32>
    %63 = vector.shape_cast %62 : vector<1x4x16xf32> to vector<4x16xf32>
    %c0_53 = arith.constant 0 : index
    %c0_54 = arith.constant 0 : index
    %c235 = arith.constant 235 : index
    %64 = vector.load %arg4[%c0_53, %c0_54, %c235] : memref<2x8x422xf32, #tpu.memory_space<vmem>>, vector<1x4x16xf32>
    %65 = vector.shape_cast %64 : vector<1x4x16xf32> to vector<4x16xf32>
    %66 = vector.shape_cast %63 : vector<4x16xf32> to vector<1x4x16xf32>
    tpu.vector_store %arg4[%c0_53, %c0_54, %c235], %66 {strides = array<i32>} : memref<2x8x422xf32, #tpu.memory_space<vmem>>, vector<1x4x16xf32>,
    %c0_55 = arith.constant 0 : index
    %c0_56 = arith.constant 0 : index
    %c208 = arith.constant 208 : index
    %67 = vector.load %arg1[%c0_55, %c0_56, %c208] : memref<2x4x256xf32, #tpu.memory_space<vmem>>, vector<1x4x16xf32>
    %68 = vector.shape_cast %67 : vector<1x4x16xf32> to vector<4x16xf32>
    %c0_57 = arith.constant 0 : index
    %c0_58 = arith.constant 0 : index
    %c253 = arith.constant 253 : index
    %69 = vector.load %arg4[%c0_57, %c0_58, %c253] : memref<2x8x422xf32, #tpu.memory_space<vmem>>, vector<1x4x16xf32>
    %70 = vector.shape_cast %69 : vector<1x4x16xf32> to vector<4x16xf32>
    %71 = vector.shape_cast %68 : vector<4x16xf32> to vector<1x4x16xf32>
    tpu.vector_store %arg4[%c0_57, %c0_58, %c253], %71 {strides = array<i32>} : memref<2x8x422xf32, #tpu.memory_space<vmem>>, vector<1x4x16xf32>,
    %c0_59 = arith.constant 0 : index
    %c0_60 = arith.constant 0 : index
    %c224 = arith.constant 224 : index
    %72 = vector.load %arg1[%c0_59, %c0_60, %c224] : memref<2x4x256xf32, #tpu.memory_space<vmem>>, vector<1x4x16xf32>
    %73 = vector.shape_cast %72 : vector<1x4x16xf32> to vector<4x16xf32>
    %c0_61 = arith.constant 0 : index
    %c0_62 = arith.constant 0 : index
    %c271 = arith.constant 271 : index
    %74 = vector.load %arg4[%c0_61, %c0_62, %c271] : memref<2x8x422xf32, #tpu.memory_space<vmem>>, vector<1x4x16xf32>
    %75 = vector.shape_cast %74 : vector<1x4x16xf32> to vector<4x16xf32>
    %76 = vector.shape_cast %73 : vector<4x16xf32> to vector<1x4x16xf32>
    tpu.vector_store %arg4[%c0_61, %c0_62, %c271], %76 {strides = array<i32>} : memref<2x8x422xf32, #tpu.memory_space<vmem>>, vector<1x4x16xf32>,
    %c0_63 = arith.constant 0 : index
    %c0_64 = arith.constant 0 : index
    %c240 = arith.constant 240 : index
    %77 = vector.load %arg1[%c0_63, %c0_64, %c240] : memref<2x4x256xf32, #tpu.memory_space<vmem>>, vector<1x4x16xf32>
    %78 = vector.shape_cast %77 : vector<1x4x16xf32> to vector<4x16xf32>
    %c0_65 = arith.constant 0 : index
    %c0_66 = arith.constant 0 : index
    %c289 = arith.constant 289 : index
    %79 = vector.load %arg4[%c0_65, %c0_66, %c289] : memref<2x8x422xf32, #tpu.memory_space<vmem>>, vector<1x4x16xf32>
    %80 = vector.shape_cast %79 : vector<1x4x16xf32> to vector<4x16xf32>
    %81 = vector.shape_cast %78 : vector<4x16xf32> to vector<1x4x16xf32>
    tpu.vector_store %arg4[%c0_65, %c0_66, %c289], %81 {strides = array<i32>} : memref<2x8x422xf32, #tpu.memory_space<vmem>>, vector<1x4x16xf32>,
    %c1 = arith.constant 1 : index
    %c0_67 = arith.constant 0 : index
    %c0_68 = arith.constant 0 : index
    %82 = vector.load %arg1[%c1, %c0_67, %c0_68] : memref<2x4x256xf32, #tpu.memory_space<vmem>>, vector<1x4x16xf32>
    %83 = vector.shape_cast %82 : vector<1x4x16xf32> to vector<4x16xf32>
    %c1_69 = arith.constant 1 : index
    %c0_70 = arith.constant 0 : index
    %c19_71 = arith.constant 19 : index
    %84 = vector.load %arg4[%c1_69, %c0_70, %c19_71] : memref<2x8x422xf32, #tpu.memory_space<vmem>>, vector<1x4x16xf32>
    %85 = vector.shape_cast %84 : vector<1x4x16xf32> to vector<4x16xf32>
    %86 = vector.shape_cast %83 : vector<4x16xf32> to vector<1x4x16xf32>
    tpu.vector_store %arg4[%c1_69, %c0_70, %c19_71], %86 {strides = array<i32>} : memref<2x8x422xf32, #tpu.memory_space<vmem>>, vector<1x4x16xf32>,
    %c1_72 = arith.constant 1 : index
    %c0_73 = arith.constant 0 : index
    %c16_74 = arith.constant 16 : index
    %87 = vector.load %arg1[%c1_72, %c0_73, %c16_74] : memref<2x4x256xf32, #tpu.memory_space<vmem>>, vector<1x4x16xf32>
    %88 = vector.shape_cast %87 : vector<1x4x16xf32> to vector<4x16xf32>
    %c1_75 = arith.constant 1 : index
    %c0_76 = arith.constant 0 : index
    %c37_77 = arith.constant 37 : index
    %89 = vector.load %arg4[%c1_75, %c0_76, %c37_77] : memref<2x8x422xf32, #tpu.memory_space<vmem>>, vector<1x4x16xf32>
    %90 = vector.shape_cast %89 : vector<1x4x16xf32> to vector<4x16xf32>
    %91 = vector.shape_cast %88 : vector<4x16xf32> to vector<1x4x16xf32>
    tpu.vector_store %arg4[%c1_75, %c0_76, %c37_77], %91 {strides = array<i32>} : memref<2x8x422xf32, #tpu.memory_space<vmem>>, vector<1x4x16xf32>,
    %c1_78 = arith.constant 1 : index
    %c0_79 = arith.constant 0 : index
    %c32_80 = arith.constant 32 : index
    %92 = vector.load %arg1[%c1_78, %c0_79, %c32_80] : memref<2x4x256xf32, #tpu.memory_space<vmem>>, vector<1x4x16xf32>
    %93 = vector.shape_cast %92 : vector<1x4x16xf32> to vector<4x16xf32>
    %c1_81 = arith.constant 1 : index
    %c0_82 = arith.constant 0 : index
    %c55_83 = arith.constant 55 : index
    %94 = vector.load %arg4[%c1_81, %c0_82, %c55_83] : memref<2x8x422xf32, #tpu.memory_space<vmem>>, vector<1x4x16xf32>
    %95 = vector.shape_cast %94 : vector<1x4x16xf32> to vector<4x16xf32>
    %96 = vector.shape_cast %93 : vector<4x16xf32> to vector<1x4x16xf32>
    tpu.vector_store %arg4[%c1_81, %c0_82, %c55_83], %96 {strides = array<i32>} : memref<2x8x422xf32, #tpu.memory_space<vmem>>, vector<1x4x16xf32>,
    %c1_84 = arith.constant 1 : index
    %c0_85 = arith.constant 0 : index
    %c48_86 = arith.constant 48 : index
    %97 = vector.load %arg1[%c1_84, %c0_85, %c48_86] : memref<2x4x256xf32, #tpu.memory_space<vmem>>, vector<1x4x16xf32>
    %98 = vector.shape_cast %97 : vector<1x4x16xf32> to vector<4x16xf32>
    %c1_87 = arith.constant 1 : index
    %c0_88 = arith.constant 0 : index
    %c73_89 = arith.constant 73 : index
    %99 = vector.load %arg4[%c1_87, %c0_88, %c73_89] : memref<2x8x422xf32, #tpu.memory_space<vmem>>, vector<1x4x16xf32>
    %100 = vector.shape_cast %99 : vector<1x4x16xf32> to vector<4x16xf32>
    %101 = vector.shape_cast %98 : vector<4x16xf32> to vector<1x4x16xf32>
    tpu.vector_store %arg4[%c1_87, %c0_88, %c73_89], %101 {strides = array<i32>} : memref<2x8x422xf32, #tpu.memory_space<vmem>>, vector<1x4x16xf32>,
    %c1_90 = arith.constant 1 : index
    %c0_91 = arith.constant 0 : index
    %c64_92 = arith.constant 64 : index
    %102 = vector.load %arg1[%c1_90, %c0_91, %c64_92] : memref<2x4x256xf32, #tpu.memory_space<vmem>>, vector<1x4x16xf32>
    %103 = vector.shape_cast %102 : vector<1x4x16xf32> to vector<4x16xf32>
    %c1_93 = arith.constant 1 : index
    %c0_94 = arith.constant 0 : index
    %c91_95 = arith.constant 91 : index
    %104 = vector.load %arg4[%c1_93, %c0_94, %c91_95] : memref<2x8x422xf32, #tpu.memory_space<vmem>>, vector<1x4x16xf32>
    %105 = vector.shape_cast %104 : vector<1x4x16xf32> to vector<4x16xf32>
    %106 = vector.shape_cast %103 : vector<4x16xf32> to vector<1x4x16xf32>
    tpu.vector_store %arg4[%c1_93, %c0_94, %c91_95], %106 {strides = array<i32>} : memref<2x8x422xf32, #tpu.memory_space<vmem>>, vector<1x4x16xf32>,
    %c1_96 = arith.constant 1 : index
    %c0_97 = arith.constant 0 : index
    %c80_98 = arith.constant 80 : index
    %107 = vector.load %arg1[%c1_96, %c0_97, %c80_98] : memref<2x4x256xf32, #tpu.memory_space<vmem>>, vector<1x4x16xf32>
    %108 = vector.shape_cast %107 : vector<1x4x16xf32> to vector<4x16xf32>
    %c1_99 = arith.constant 1 : index
    %c0_100 = arith.constant 0 : index
    %c109_101 = arith.constant 109 : index
    %109 = vector.load %arg4[%c1_99, %c0_100, %c109_101] : memref<2x8x422xf32, #tpu.memory_space<vmem>>, vector<1x4x16xf32>
    %110 = vector.shape_cast %109 : vector<1x4x16xf32> to vector<4x16xf32>
    %111 = vector.shape_cast %108 : vector<4x16xf32> to vector<1x4x16xf32>
    tpu.vector_store %arg4[%c1_99, %c0_100, %c109_101], %111 {strides = array<i32>} : memref<2x8x422xf32, #tpu.memory_space<vmem>>, vector<1x4x16xf32>,
    %c1_102 = arith.constant 1 : index
    %c0_103 = arith.constant 0 : index
    %c96_104 = arith.constant 96 : index
    %112 = vector.load %arg1[%c1_102, %c0_103, %c96_104] : memref<2x4x256xf32, #tpu.memory_space<vmem>>, vector<1x4x16xf32>
    %113 = vector.shape_cast %112 : vector<1x4x16xf32> to vector<4x16xf32>
    %c1_105 = arith.constant 1 : index
    %c0_106 = arith.constant 0 : index
    %c127_107 = arith.constant 127 : index
    %114 = vector.load %arg4[%c1_105, %c0_106, %c127_107] : memref<2x8x422xf32, #tpu.memory_space<vmem>>, vector<1x4x16xf32>
    %115 = vector.shape_cast %114 : vector<1x4x16xf32> to vector<4x16xf32>
    %116 = vector.shape_cast %113 : vector<4x16xf32> to vector<1x4x16xf32>
    tpu.vector_store %arg4[%c1_105, %c0_106, %c127_107], %116 {strides = array<i32>} : memref<2x8x422xf32, #tpu.memory_space<vmem>>, vector<1x4x16xf32>,
    %c1_108 = arith.constant 1 : index
    %c0_109 = arith.constant 0 : index
    %c112_110 = arith.constant 112 : index
    %117 = vector.load %arg1[%c1_108, %c0_109, %c112_110] : memref<2x4x256xf32, #tpu.memory_space<vmem>>, vector<1x4x16xf32>
    %118 = vector.shape_cast %117 : vector<1x4x16xf32> to vector<4x16xf32>
    %c1_111 = arith.constant 1 : index
    %c0_112 = arith.constant 0 : index
    %c145_113 = arith.constant 145 : index
    %119 = vector.load %arg4[%c1_111, %c0_112, %c145_113] : memref<2x8x422xf32, #tpu.memory_space<vmem>>, vector<1x4x16xf32>
    %120 = vector.shape_cast %119 : vector<1x4x16xf32> to vector<4x16xf32>
    %121 = vector.shape_cast %118 : vector<4x16xf32> to vector<1x4x16xf32>
    tpu.vector_store %arg4[%c1_111, %c0_112, %c145_113], %121 {strides = array<i32>} : memref<2x8x422xf32, #tpu.memory_space<vmem>>, vector<1x4x16xf32>,
    %c1_114 = arith.constant 1 : index
    %c0_115 = arith.constant 0 : index
    %c128_116 = arith.constant 128 : index
    %122 = vector.load %arg1[%c1_114, %c0_115, %c128_116] : memref<2x4x256xf32, #tpu.memory_space<vmem>>, vector<1x4x16xf32>
    %123 = vector.shape_cast %122 : vector<1x4x16xf32> to vector<4x16xf32>
    %c1_117 = arith.constant 1 : index
    %c0_118 = arith.constant 0 : index
    %c163_119 = arith.constant 163 : index
    %124 = vector.load %arg4[%c1_117, %c0_118, %c163_119] : memref<2x8x422xf32, #tpu.memory_space<vmem>>, vector<1x4x16xf32>
    %125 = vector.shape_cast %124 : vector<1x4x16xf32> to vector<4x16xf32>
    %126 = vector.shape_cast %123 : vector<4x16xf32> to vector<1x4x16xf32>
    tpu.vector_store %arg4[%c1_117, %c0_118, %c163_119], %126 {strides = array<i32>} : memref<2x8x422xf32, #tpu.memory_space<vmem>>, vector<1x4x16xf32>,
    %c1_120 = arith.constant 1 : index
    %c0_121 = arith.constant 0 : index
    %c144_122 = arith.constant 144 : index
    %127 = vector.load %arg1[%c1_120, %c0_121, %c144_122] : memref<2x4x256xf32, #tpu.memory_space<vmem>>, vector<1x4x16xf32>
    %128 = vector.shape_cast %127 : vector<1x4x16xf32> to vector<4x16xf32>
    %c1_123 = arith.constant 1 : index
    %c0_124 = arith.constant 0 : index
    %c181_125 = arith.constant 181 : index
    %129 = vector.load %arg4[%c1_123, %c0_124, %c181_125] : memref<2x8x422xf32, #tpu.memory_space<vmem>>, vector<1x4x16xf32>
    %130 = vector.shape_cast %129 : vector<1x4x16xf32> to vector<4x16xf32>
    %131 = vector.shape_cast %128 : vector<4x16xf32> to vector<1x4x16xf32>
    tpu.vector_store %arg4[%c1_123, %c0_124, %c181_125], %131 {strides = array<i32>} : memref<2x8x422xf32, #tpu.memory_space<vmem>>, vector<1x4x16xf32>,
    %c1_126 = arith.constant 1 : index
    %c0_127 = arith.constant 0 : index
    %c160_128 = arith.constant 160 : index
    %132 = vector.load %arg1[%c1_126, %c0_127, %c160_128] : memref<2x4x256xf32, #tpu.memory_space<vmem>>, vector<1x4x16xf32>
    %133 = vector.shape_cast %132 : vector<1x4x16xf32> to vector<4x16xf32>
    %c1_129 = arith.constant 1 : index
    %c0_130 = arith.constant 0 : index
    %c199_131 = arith.constant 199 : index
    %134 = vector.load %arg4[%c1_129, %c0_130, %c199_131] : memref<2x8x422xf32, #tpu.memory_space<vmem>>, vector<1x4x16xf32>
    %135 = vector.shape_cast %134 : vector<1x4x16xf32> to vector<4x16xf32>
    %136 = vector.shape_cast %133 : vector<4x16xf32> to vector<1x4x16xf32>
    tpu.vector_store %arg4[%c1_129, %c0_130, %c199_131], %136 {strides = array<i32>} : memref<2x8x422xf32, #tpu.memory_space<vmem>>, vector<1x4x16xf32>,
    %c1_132 = arith.constant 1 : index
    %c0_133 = arith.constant 0 : index
    %c176_134 = arith.constant 176 : index
    %137 = vector.load %arg1[%c1_132, %c0_133, %c176_134] : memref<2x4x256xf32, #tpu.memory_space<vmem>>, vector<1x4x16xf32>
    %138 = vector.shape_cast %137 : vector<1x4x16xf32> to vector<4x16xf32>
    %c1_135 = arith.constant 1 : index
    %c0_136 = arith.constant 0 : index
    %c217_137 = arith.constant 217 : index
    %139 = vector.load %arg4[%c1_135, %c0_136, %c217_137] : memref<2x8x422xf32, #tpu.memory_space<vmem>>, vector<1x4x16xf32>
    %140 = vector.shape_cast %139 : vector<1x4x16xf32> to vector<4x16xf32>
    %141 = vector.shape_cast %138 : vector<4x16xf32> to vector<1x4x16xf32>
    tpu.vector_store %arg4[%c1_135, %c0_136, %c217_137], %141 {strides = array<i32>} : memref<2x8x422xf32, #tpu.memory_space<vmem>>, vector<1x4x16xf32>,
    %c1_138 = arith.constant 1 : index
    %c0_139 = arith.constant 0 : index
    %c192_140 = arith.constant 192 : index
    %142 = vector.load %arg1[%c1_138, %c0_139, %c192_140] : memref<2x4x256xf32, #tpu.memory_space<vmem>>, vector<1x4x16xf32>
    %143 = vector.shape_cast %142 : vector<1x4x16xf32> to vector<4x16xf32>
    %c1_141 = arith.constant 1 : index
    %c0_142 = arith.constant 0 : index
    %c235_143 = arith.constant 235 : index
    %144 = vector.load %arg4[%c1_141, %c0_142, %c235_143] : memref<2x8x422xf32, #tpu.memory_space<vmem>>, vector<1x4x16xf32>
    %145 = vector.shape_cast %144 : vector<1x4x16xf32> to vector<4x16xf32>
    %146 = vector.shape_cast %143 : vector<4x16xf32> to vector<1x4x16xf32>
    tpu.vector_store %arg4[%c1_141, %c0_142, %c235_143], %146 {strides = array<i32>} : memref<2x8x422xf32, #tpu.memory_space<vmem>>, vector<1x4x16xf32>,
    %c1_144 = arith.constant 1 : index
    %c0_145 = arith.constant 0 : index
    %c208_146 = arith.constant 208 : index
    %147 = vector.load %arg1[%c1_144, %c0_145, %c208_146] : memref<2x4x256xf32, #tpu.memory_space<vmem>>, vector<1x4x16xf32>
    %148 = vector.shape_cast %147 : vector<1x4x16xf32> to vector<4x16xf32>
    %c1_147 = arith.constant 1 : index
    %c0_148 = arith.constant 0 : index
    %c253_149 = arith.constant 253 : index
    %149 = vector.load %arg4[%c1_147, %c0_148, %c253_149] : memref<2x8x422xf32, #tpu.memory_space<vmem>>, vector<1x4x16xf32>
    %150 = vector.shape_cast %149 : vector<1x4x16xf32> to vector<4x16xf32>
    %151 = vector.shape_cast %148 : vector<4x16xf32> to vector<1x4x16xf32>
    tpu.vector_store %arg4[%c1_147, %c0_148, %c253_149], %151 {strides = array<i32>} : memref<2x8x422xf32, #tpu.memory_space<vmem>>, vector<1x4x16xf32>,
    %c1_150 = arith.constant 1 : index
    %c0_151 = arith.constant 0 : index
    %c224_152 = arith.constant 224 : index
    %152 = vector.load %arg1[%c1_150, %c0_151, %c224_152] : memref<2x4x256xf32, #tpu.memory_space<vmem>>, vector<1x4x16xf32>
    %153 = vector.shape_cast %152 : vector<1x4x16xf32> to vector<4x16xf32>
    %c1_153 = arith.constant 1 : index
    %c0_154 = arith.constant 0 : index
    %c271_155 = arith.constant 271 : index
    %154 = vector.load %arg4[%c1_153, %c0_154, %c271_155] : memref<2x8x422xf32, #tpu.memory_space<vmem>>, vector<1x4x16xf32>
    %155 = vector.shape_cast %154 : vector<1x4x16xf32> to vector<4x16xf32>
    %156 = vector.shape_cast %153 : vector<4x16xf32> to vector<1x4x16xf32>
    tpu.vector_store %arg4[%c1_153, %c0_154, %c271_155], %156 {strides = array<i32>} : memref<2x8x422xf32, #tpu.memory_space<vmem>>, vector<1x4x16xf32>,
    %c1_156 = arith.constant 1 : index
    %c0_157 = arith.constant 0 : index
    %c240_158 = arith.constant 240 : index
    %157 = vector.load %arg1[%c1_156, %c0_157, %c240_158] : memref<2x4x256xf32, #tpu.memory_space<vmem>>, vector<1x4x16xf32>
    %158 = vector.shape_cast %157 : vector<1x4x16xf32> to vector<4x16xf32>
    %c1_159 = arith.constant 1 : index
    %c0_160 = arith.constant 0 : index
    %c289_161 = arith.constant 289 : index
    %159 = vector.load %arg4[%c1_159, %c0_160, %c289_161] : memref<2x8x422xf32, #tpu.memory_space<vmem>>, vector<1x4x16xf32>
    %160 = vector.shape_cast %159 : vector<1x4x16xf32> to vector<4x16xf32>
    %161 = vector.shape_cast %158 : vector<4x16xf32> to vector<1x4x16xf32>
    tpu.vector_store %arg4[%c1_159, %c0_160, %c289_161], %161 {strides = array<i32>} : memref<2x8x422xf32, #tpu.memory_space<vmem>>, vector<1x4x16xf32>,
    %c0_162 = arith.constant 0 : index
    %c0_163 = arith.constant 0 : index
    %c0_164 = arith.constant 0 : index
    %162 = vector.load %arg4[%c0_162, %c0_163, %c0_164] : memref<2x8x422xf32, #tpu.memory_space<vmem>>, vector<1x8x384xf32>
    %163 = vector.shape_cast %162 : vector<1x8x384xf32> to vector<8x384xf32>
    %c0_165 = arith.constant 0 : index
    %c0_166 = arith.constant 0 : index
    %164 = vector.load %arg5[%c0_165, %c0_166] : memref<72x768xf32, #tpu.memory_space<vmem>>, vector<8x384xf32>
    tpu.vector_store %arg5[%c0_165, %c0_166], %163 {strides = array<i32>} : memref<72x768xf32, #tpu.memory_space<vmem>>, vector<8x384xf32>,
    %c0_167 = arith.constant 0 : index
    %c0_168 = arith.constant 0 : index
    %c1_169 = arith.constant 1 : index
    %165 = vector.load %arg4[%c0_167, %c0_168, %c1_169] : memref<2x8x422xf32, #tpu.memory_space<vmem>>, vector<1x8x384xf32>
    %166 = vector.shape_cast %165 : vector<1x8x384xf32> to vector<8x384xf32>
    %c8 = arith.constant 8 : index
    %c0_170 = arith.constant 0 : index
    %167 = vector.load %arg5[%c8, %c0_170] : memref<72x768xf32, #tpu.memory_space<vmem>>, vector<8x384xf32>
    tpu.vector_store %arg5[%c8, %c0_170], %166 {strides = array<i32>} : memref<72x768xf32, #tpu.memory_space<vmem>>, vector<8x384xf32>,
    %c0_171 = arith.constant 0 : index
    %c0_172 = arith.constant 0 : index
    %c2 = arith.constant 2 : index
    %168 = vector.load %arg4[%c0_171, %c0_172, %c2] : memref<2x8x422xf32, #tpu.memory_space<vmem>>, vector<1x8x384xf32>
    %169 = vector.shape_cast %168 : vector<1x8x384xf32> to vector<8x384xf32>
    %c16_173 = arith.constant 16 : index
    %c0_174 = arith.constant 0 : index
    %170 = vector.load %arg5[%c16_173, %c0_174] : memref<72x768xf32, #tpu.memory_space<vmem>>, vector<8x384xf32>
    tpu.vector_store %arg5[%c16_173, %c0_174], %169 {strides = array<i32>} : memref<72x768xf32, #tpu.memory_space<vmem>>, vector<8x384xf32>,
    %c0_175 = arith.constant 0 : index
    %c0_176 = arith.constant 0 : index
    %c18 = arith.constant 18 : index
    %171 = vector.load %arg4[%c0_175, %c0_176, %c18] : memref<2x8x422xf32, #tpu.memory_space<vmem>>, vector<1x8x384xf32>
    %172 = vector.shape_cast %171 : vector<1x8x384xf32> to vector<8x384xf32>
    %c24 = arith.constant 24 : index
    %c0_177 = arith.constant 0 : index
    %173 = vector.load %arg5[%c24, %c0_177] : memref<72x768xf32, #tpu.memory_space<vmem>>, vector<8x384xf32>
    tpu.vector_store %arg5[%c24, %c0_177], %172 {strides = array<i32>} : memref<72x768xf32, #tpu.memory_space<vmem>>, vector<8x384xf32>,
    %c0_178 = arith.constant 0 : index
    %c0_179 = arith.constant 0 : index
    %c19_180 = arith.constant 19 : index
    %174 = vector.load %arg4[%c0_178, %c0_179, %c19_180] : memref<2x8x422xf32, #tpu.memory_space<vmem>>, vector<1x8x384xf32>
    %175 = vector.shape_cast %174 : vector<1x8x384xf32> to vector<8x384xf32>
    %c32_181 = arith.constant 32 : index
    %c0_182 = arith.constant 0 : index
    %176 = vector.load %arg5[%c32_181, %c0_182] : memref<72x768xf32, #tpu.memory_space<vmem>>, vector<8x384xf32>
    tpu.vector_store %arg5[%c32_181, %c0_182], %175 {strides = array<i32>} : memref<72x768xf32, #tpu.memory_space<vmem>>, vector<8x384xf32>,
    %c0_183 = arith.constant 0 : index
    %c0_184 = arith.constant 0 : index
    %c20 = arith.constant 20 : index
    %177 = vector.load %arg4[%c0_183, %c0_184, %c20] : memref<2x8x422xf32, #tpu.memory_space<vmem>>, vector<1x8x384xf32>
    %178 = vector.shape_cast %177 : vector<1x8x384xf32> to vector<8x384xf32>
    %c40 = arith.constant 40 : index
    %c0_185 = arith.constant 0 : index
    %179 = vector.load %arg5[%c40, %c0_185] : memref<72x768xf32, #tpu.memory_space<vmem>>, vector<8x384xf32>
    tpu.vector_store %arg5[%c40, %c0_185], %178 {strides = array<i32>} : memref<72x768xf32, #tpu.memory_space<vmem>>, vector<8x384xf32>,
    %c0_186 = arith.constant 0 : index
    %c0_187 = arith.constant 0 : index
    %c36 = arith.constant 36 : index
    %180 = vector.load %arg4[%c0_186, %c0_187, %c36] : memref<2x8x422xf32, #tpu.memory_space<vmem>>, vector<1x8x384xf32>
    %181 = vector.shape_cast %180 : vector<1x8x384xf32> to vector<8x384xf32>
    %c48_188 = arith.constant 48 : index
    %c0_189 = arith.constant 0 : index
    %182 = vector.load %arg5[%c48_188, %c0_189] : memref<72x768xf32, #tpu.memory_space<vmem>>, vector<8x384xf32>
    tpu.vector_store %arg5[%c48_188, %c0_189], %181 {strides = array<i32>} : memref<72x768xf32, #tpu.memory_space<vmem>>, vector<8x384xf32>,
    %c0_190 = arith.constant 0 : index
    %c0_191 = arith.constant 0 : index
    %c37_192 = arith.constant 37 : index
    %183 = vector.load %arg4[%c0_190, %c0_191, %c37_192] : memref<2x8x422xf32, #tpu.memory_space<vmem>>, vector<1x8x384xf32>
    %184 = vector.shape_cast %183 : vector<1x8x384xf32> to vector<8x384xf32>
    %c56 = arith.constant 56 : index
    %c0_193 = arith.constant 0 : index
    %185 = vector.load %arg5[%c56, %c0_193] : memref<72x768xf32, #tpu.memory_space<vmem>>, vector<8x384xf32>
    tpu.vector_store %arg5[%c56, %c0_193], %184 {strides = array<i32>} : memref<72x768xf32, #tpu.memory_space<vmem>>, vector<8x384xf32>,
    %c0_194 = arith.constant 0 : index
    %c0_195 = arith.constant 0 : index
    %c38 = arith.constant 38 : index
    %186 = vector.load %arg4[%c0_194, %c0_195, %c38] : memref<2x8x422xf32, #tpu.memory_space<vmem>>, vector<1x8x384xf32>
    %187 = vector.shape_cast %186 : vector<1x8x384xf32> to vector<8x384xf32>
    %c64_196 = arith.constant 64 : index
    %c0_197 = arith.constant 0 : index
    %188 = vector.load %arg5[%c64_196, %c0_197] : memref<72x768xf32, #tpu.memory_space<vmem>>, vector<8x384xf32>
    tpu.vector_store %arg5[%c64_196, %c0_197], %187 {strides = array<i32>} : memref<72x768xf32, #tpu.memory_space<vmem>>, vector<8x384xf32>,
    %c1_198 = arith.constant 1 : index
    %c0_199 = arith.constant 0 : index
    %c0_200 = arith.constant 0 : index
    %189 = vector.load %arg4[%c1_198, %c0_199, %c0_200] : memref<2x8x422xf32, #tpu.memory_space<vmem>>, vector<1x8x384xf32>
    %190 = vector.shape_cast %189 : vector<1x8x384xf32> to vector<8x384xf32>
    %c0_201 = arith.constant 0 : index
    %c384 = arith.constant 384 : index
    %191 = vector.load %arg5[%c0_201, %c384] : memref<72x768xf32, #tpu.memory_space<vmem>>, vector<8x384xf32>
    tpu.vector_store %arg5[%c0_201, %c384], %190 {strides = array<i32>} : memref<72x768xf32, #tpu.memory_space<vmem>>, vector<8x384xf32>,
    %c1_202 = arith.constant 1 : index
    %c0_203 = arith.constant 0 : index
    %c1_204 = arith.constant 1 : index
    %192 = vector.load %arg4[%c1_202, %c0_203, %c1_204] : memref<2x8x422xf32, #tpu.memory_space<vmem>>, vector<1x8x384xf32>
    %193 = vector.shape_cast %192 : vector<1x8x384xf32> to vector<8x384xf32>
    %c8_205 = arith.constant 8 : index
    %c384_206 = arith.constant 384 : index
    %194 = vector.load %arg5[%c8_205, %c384_206] : memref<72x768xf32, #tpu.memory_space<vmem>>, vector<8x384xf32>
    tpu.vector_store %arg5[%c8_205, %c384_206], %193 {strides = array<i32>} : memref<72x768xf32, #tpu.memory_space<vmem>>, vector<8x384xf32>,
    %c1_207 = arith.constant 1 : index
    %c0_208 = arith.constant 0 : index
    %c2_209 = arith.constant 2 : index
    %195 = vector.load %arg4[%c1_207, %c0_208, %c2_209] : memref<2x8x422xf32, #tpu.memory_space<vmem>>, vector<1x8x384xf32>
    %196 = vector.shape_cast %195 : vector<1x8x384xf32> to vector<8x384xf32>
    %c16_210 = arith.constant 16 : index
    %c384_211 = arith.constant 384 : index
    %197 = vector.load %arg5[%c16_210, %c384_211] : memref<72x768xf32, #tpu.memory_space<vmem>>, vector<8x384xf32>
    tpu.vector_store %arg5[%c16_210, %c384_211], %196 {strides = array<i32>} : memref<72x768xf32, #tpu.memory_space<vmem>>, vector<8x384xf32>,
    %c1_212 = arith.constant 1 : index
    %c0_213 = arith.constant 0 : index
    %c18_214 = arith.constant 18 : index
    %198 = vector.load %arg4[%c1_212, %c0_213, %c18_214] : memref<2x8x422xf32, #tpu.memory_space<vmem>>, vector<1x8x384xf32>
    %199 = vector.shape_cast %198 : vector<1x8x384xf32> to vector<8x384xf32>
    %c24_215 = arith.constant 24 : index
    %c384_216 = arith.constant 384 : index
    %200 = vector.load %arg5[%c24_215, %c384_216] : memref<72x768xf32, #tpu.memory_space<vmem>>, vector<8x384xf32>
    tpu.vector_store %arg5[%c24_215, %c384_216], %199 {strides = array<i32>} : memref<72x768xf32, #tpu.memory_space<vmem>>, vector<8x384xf32>,
    %c1_217 = arith.constant 1 : index
    %c0_218 = arith.constant 0 : index
    %c19_219 = arith.constant 19 : index
    %201 = vector.load %arg4[%c1_217, %c0_218, %c19_219] : memref<2x8x422xf32, #tpu.memory_space<vmem>>, vector<1x8x384xf32>
    %202 = vector.shape_cast %201 : vector<1x8x384xf32> to vector<8x384xf32>
    %c32_220 = arith.constant 32 : index
    %c384_221 = arith.constant 384 : index
    %203 = vector.load %arg5[%c32_220, %c384_221] : memref<72x768xf32, #tpu.memory_space<vmem>>, vector<8x384xf32>
    tpu.vector_store %arg5[%c32_220, %c384_221], %202 {strides = array<i32>} : memref<72x768xf32, #tpu.memory_space<vmem>>, vector<8x384xf32>,
    %c1_222 = arith.constant 1 : index
    %c0_223 = arith.constant 0 : index
    %c20_224 = arith.constant 20 : index
    %204 = vector.load %arg4[%c1_222, %c0_223, %c20_224] : memref<2x8x422xf32, #tpu.memory_space<vmem>>, vector<1x8x384xf32>
    %205 = vector.shape_cast %204 : vector<1x8x384xf32> to vector<8x384xf32>
    %c40_225 = arith.constant 40 : index
    %c384_226 = arith.constant 384 : index
    %206 = vector.load %arg5[%c40_225, %c384_226] : memref<72x768xf32, #tpu.memory_space<vmem>>, vector<8x384xf32>
    tpu.vector_store %arg5[%c40_225, %c384_226], %205 {strides = array<i32>} : memref<72x768xf32, #tpu.memory_space<vmem>>, vector<8x384xf32>,
    %c1_227 = arith.constant 1 : index
    %c0_228 = arith.constant 0 : index
    %c36_229 = arith.constant 36 : index
    %207 = vector.load %arg4[%c1_227, %c0_228, %c36_229] : memref<2x8x422xf32, #tpu.memory_space<vmem>>, vector<1x8x384xf32>
    %208 = vector.shape_cast %207 : vector<1x8x384xf32> to vector<8x384xf32>
    %c48_230 = arith.constant 48 : index
    %c384_231 = arith.constant 384 : index
    %209 = vector.load %arg5[%c48_230, %c384_231] : memref<72x768xf32, #tpu.memory_space<vmem>>, vector<8x384xf32>
    tpu.vector_store %arg5[%c48_230, %c384_231], %208 {strides = array<i32>} : memref<72x768xf32, #tpu.memory_space<vmem>>, vector<8x384xf32>,
    %c1_232 = arith.constant 1 : index
    %c0_233 = arith.constant 0 : index
    %c37_234 = arith.constant 37 : index
    %210 = vector.load %arg4[%c1_232, %c0_233, %c37_234] : memref<2x8x422xf32, #tpu.memory_space<vmem>>, vector<1x8x384xf32>
    %211 = vector.shape_cast %210 : vector<1x8x384xf32> to vector<8x384xf32>
    %c56_235 = arith.constant 56 : index
    %c384_236 = arith.constant 384 : index
    %212 = vector.load %arg5[%c56_235, %c384_236] : memref<72x768xf32, #tpu.memory_space<vmem>>, vector<8x384xf32>
    tpu.vector_store %arg5[%c56_235, %c384_236], %211 {strides = array<i32>} : memref<72x768xf32, #tpu.memory_space<vmem>>, vector<8x384xf32>,
    %c1_237 = arith.constant 1 : index
    %c0_238 = arith.constant 0 : index
    %c38_239 = arith.constant 38 : index
    %213 = vector.load %arg4[%c1_237, %c0_238, %c38_239] : memref<2x8x422xf32, #tpu.memory_space<vmem>>, vector<1x8x384xf32>
    %214 = vector.shape_cast %213 : vector<1x8x384xf32> to vector<8x384xf32>
    %c64_240 = arith.constant 64 : index
    %c384_241 = arith.constant 384 : index
    %215 = vector.load %arg5[%c64_240, %c384_241] : memref<72x768xf32, #tpu.memory_space<vmem>>, vector<8x384xf32>
    tpu.vector_store %arg5[%c64_240, %c384_241], %214 {strides = array<i32>} : memref<72x768xf32, #tpu.memory_space<vmem>>, vector<8x384xf32>,
    %c0_242 = arith.constant 0 : index
    %c0_243 = arith.constant 0 : index
    %216 = vector.load %arg2[%c0_242, %c0_243] : memref<8x72xf32, #tpu.memory_space<vmem>>, vector<8x72xf32>
    %c0_244 = arith.constant 0 : index
    %c0_245 = arith.constant 0 : index
    %217 = vector.load %arg5[%c0_244, %c0_245] : memref<72x768xf32, #tpu.memory_space<vmem>>, vector<72x768xf32>
    %cst_246 = arith.constant dense<0.000000e+00> : vector<8x768xf32>
    %218 = tpu.matmul %216, %217, %cst_246 {dimension_numbers = #tpu.dot_dimension_numbers<[1], [0], [0], [1], [0, 0, 1, 1], [], []>} : vector<8x72xf32>, vector<72x768xf32>, vector<8x768xf32> -> vector<8x768xf32>
    %cst_247 = arith.constant 0.000000e+00 : f32
    %219 = vector.broadcast %cst_247 : f32 to vector<8x768xf32>
    %220 = arith.maximumf %218, %219 : vector<8x768xf32>
    %221 = vector.extract_strided_slice %220 {offsets = [0, 0], sizes = [8, 384], strides = [1, 1]} : vector<8x768xf32> to vector<8x384xf32>
    %c0_248 = arith.constant 0 : index
    %c0_249 = arith.constant 0 : index
    %c0_250 = arith.constant 0 : index
    %222 = vector.load %arg3[%c0_248, %c0_249, %c0_250] : memref<2x8x384xf32, #tpu.memory_space<vmem>>, vector<1x8x384xf32>
    %223 = vector.shape_cast %222 : vector<1x8x384xf32> to vector<8x384xf32>
    %224 = vector.shape_cast %221 : vector<8x384xf32> to vector<1x8x384xf32>
    tpu.vector_store %arg3[%c0_248, %c0_249, %c0_250], %224 {strides = array<i32>} : memref<2x8x384xf32, #tpu.memory_space<vmem>>, vector<1x8x384xf32>,
    %225 = vector.extract_strided_slice %220 {offsets = [0, 384], sizes = [8, 384], strides = [1, 1]} : vector<8x768xf32> to vector<8x384xf32>
    %c1_251 = arith.constant 1 : index
    %c0_252 = arith.constant 0 : index
    %c0_253 = arith.constant 0 : index
    %226 = vector.load %arg3[%c1_251, %c0_252, %c0_253] : memref<2x8x384xf32, #tpu.memory_space<vmem>>, vector<1x8x384xf32>
    %227 = vector.shape_cast %226 : vector<1x8x384xf32> to vector<8x384xf32>
    %228 = vector.shape_cast %225 : vector<8x384xf32> to vector<1x8x384xf32>
    tpu.vector_store %arg3[%c1_251, %c0_252, %c0_253], %228 {strides = array<i32>} : memref<2x8x384xf32, #tpu.memory_space<vmem>>, vector<1x8x384xf32>,
    return
  }
  func.func @transform_0(%arg0: i32) -> (i32, i32, i32) {
    %c0_i32 = arith.constant 0 : i32
    %c0_i32_0 = arith.constant 0 : i32
    %c0_i32_1 = arith.constant 0 : i32
    %c0_i32_2 = arith.constant 0 : i32
    return %c0_i32, %c0_i32_0, %c0_i32_1 : i32, i32, i32
  }
  func.func @transform_1(%arg0: i32) -> (i32, i32) {
    %c0_i32 = arith.constant 0 : i32
    %c0_i32_0 = arith.constant 0 : i32
    %c0_i32_1 = arith.constant 0 : i32
    return %c0_i32, %c0_i32_0 : i32, i32
  }
  func.func @transform_2(%arg0: i32) -> (i32, i32, i32) {
    %c0_i32 = arith.constant 0 : i32
    %c0_i32_0 = arith.constant 0 : i32
    %c0_i32_1 = arith.constant 0 : i32
    %c0_i32_2 = arith.constant 0 : i32
    return %c0_i32, %c0_i32_0, %c0_i32_1 : i32, i32, i32
  }
}

</mosaic_0001>

<llo_original>
// kernel: basic_conv2d.1
$region0: #{basic_conv2d.1}
  #allocation0 [shape = 'u32[]', space=smem, size = 0x4, offset = 0x4, fixed_abs, tag = 'smem constant byte address 0x4 - core index']
  #allocation1 [shape = 'u32[72,128]{1,0:T(1,128)}', space=vmem, size = 0x9000, scoped, tag = 'internal scratch']
  #allocation2 [shape = 'f32[2,8,422]{2,1,0:T(8,128)}', space=vmem, size = 0x8000, scoped, tag = 'scratch operand']
  #allocation3 [shape = 'f32[72,768]{1,0:T(8,128)}', space=vmem, size = 0x36000, scoped, tag = 'scratch operand']
  %s0 = inlined_call_operand.vmem [shape: f32[2,4,256], index: 0, kind: input, shape index: {}]
  %s1 = inlined_call_operand.vmem [shape: f32[8,72], index: 1, kind: input, shape index: {}]
  %s2 = inlined_call_operand.vmem [shape: f32[2,8,384], index: 2, kind: output, shape index: {}]
  %s3 = sld [smem:[#allocation0]]
  $region18: #{basic_conv2d.1} parent=0
    _
  %s5 = ssub.s32 1, %s3
  %s6 = scalar_select 0, %s5, %s3
  // Predicated region
  $region2: #{basic_conv2d.1} parent=0 // pred_check
    _
  $region3: #{basic_conv2d.1} parent=0 // pred_check_branch
    %8 = sbr.rel (0) target = $region5
  $region4: #{basic_conv2d.1} parent=0 // pred_region
    _
  $region5: #{basic_conv2d.1} parent=0 // pred_fallthru
    _
  // Predicated region
  $region6: #{basic_conv2d.1} parent=0 // pred_check
    _
  $region7: #{basic_conv2d.1} parent=0 // pred_check_branch
    %10 = sbr.rel (0) target = $region9
  $region8: #{basic_conv2d.1} parent=0 // pred_region
    _
  $region9: #{basic_conv2d.1} parent=0 // pred_fallthru
    _
  %11 = vst [vmem:[#allocation2] sm:$0xff] 0.0
  %12 = vst [vmem:[#allocation2 + $0x8] sm:$0xff] 0.0
  %13 = vst [vmem:[#allocation2 + $0x10] sm:$0xff] 0.0
  %vm14 = vcmask 310272
  %15 = vst.msk [vmem:[#allocation2 + $0x18] sm:$0xff] %vm14, 0.0
  %16 = vst [vmem:[#allocation2 + $0x20] sm:$0xff] 0.0
  %17 = vst [vmem:[#allocation2 + $0x28] sm:$0xff] 0.0
  %18 = vst [vmem:[#allocation2 + $0x30] sm:$0xff] 0.0
  %19 = vst.msk [vmem:[#allocation2 + $0x38] sm:$0xff] %vm14, 0.0
  %v20 = vld [vmem:[%s0] sm:$0xf]
  %22 = vst [vmem:[#allocation1] ss:$2 sm:$0xff] %v20
  %v23 = vld.sshfl [vmem:[#allocation1] sm:$0xff pattern:$0x75316420]
  %24 = vrot.lane.b32.xlu0 %v23, 19
  %v25 = vpop.permute.xlu0 %24
  %vm27 = vcmask 281752
  %28 = vst.msk [vmem:[#allocation2] sm:$0xf] %vm27, %v25
  %v29 = vld [vmem:[%s0] sm:$0xf]
  %31 = vst [vmem:[#allocation1] ss:$2 sm:$0xff] %v29
  %v32 = vld.sshfl [vmem:[#allocation1] sm:$0xff pattern:$0x75316420]
  %33 = vrot.lane.b32.xlu0 %v32, 21
  %v34 = vpop.permute.xlu0 %33
  %vm36 = vcmask 429352
  %37 = vst.msk [vmem:[#allocation2] sm:$0xf] %vm36, %v34
  %v38 = vld [vmem:[%s0] sm:$0xf]
  %40 = vst [vmem:[#allocation1] ss:$2 sm:$0xff] %v38
  %v41 = vld.sshfl [vmem:[#allocation1] sm:$0xff pattern:$0x75316420]
  %42 = vrot.lane.b32.xlu0 %v41, 23
  %v43 = vpop.permute.xlu0 %42
  %vm45 = vcmask 576952
  %46 = vst.msk [vmem:[#allocation2] sm:$0xf] %vm45, %v43
  %v47 = vld [vmem:[%s0] sm:$0xf]
  %49 = vst [vmem:[#allocation1] ss:$2 sm:$0xff] %v47
  %v50 = vld.sshfl [vmem:[#allocation1] sm:$0xff pattern:$0x75316420]
  %51 = vrot.lane.b32.xlu0 %v50, 25
  %v52 = vpop.permute.xlu0 %51
  %vm54 = vcmask 724552
  %55 = vst.msk [vmem:[#allocation2] sm:$0xf] %vm54, %v52
  %v56 = vld [vmem:[%s0] sm:$0xf]
  %58 = vst [vmem:[#allocation1] ss:$2 sm:$0xff] %v56
  %v59 = vld.sshfl [vmem:[#allocation1] sm:$0xff pattern:$0x75316420]
  %60 = vrot.lane.b32.xlu0 %v59, 27
  %v61 = vpop.permute.xlu0 %60
  %vm63 = vcmask 872152
  %64 = vst.msk [vmem:[#allocation2] sm:$0xf] %vm63, %v61
  %v65 = vld [vmem:[%s0] sm:$0xf]
  %67 = vst [vmem:[#allocation1] ss:$2 sm:$0xff] %v65
  %v68 = vld.sshfl [vmem:[#allocation1] sm:$0xff pattern:$0x75316420]
  %69 = vrot.lane.b32.xlu0 %v68, 29
  %v70 = vpop.permute.xlu0 %69
  %vm72 = vcmask 1019752
  %73 = vst.msk [vmem:[#allocation2] sm:$0xf] %vm72, %v70
  %v74 = vld [vmem:[%s0] sm:$0xf]
  %76 = vst [vmem:[#allocation1] ss:$2 sm:$0xff] %v74
  %v77 = vld.sshfl [vmem:[#allocation1] sm:$0xff pattern:$0x75316420]
  %78 = vrot.lane.b32.xlu0 %v77, 31
  %v79 = vpop.permute.xlu0 %78
  %vm81 = vcmask 1044472
  %82 = vst.msk [vmem:[#allocation2] sm:$0xf] %vm81, %v79
  %vm83 = vcmask 117760
  %84 = vst.msk [vmem:[#allocation2 + $0x8] sm:$0xf] %vm83, %v79
  %v85 = vld [vmem:[%s0] sm:$0xf]
  %87 = vst [vmem:[#allocation1] ss:$2 sm:$0xff] %v85
  %v88 = vld.sshfl [vmem:[#allocation1] sm:$0xff pattern:$0x75316420]
  %89 = vrot.lane.b32.xlu0 %v88, 33
  %v90 = vpop.permute.xlu0 %89
  %vm92 = vcmask 265352
  %93 = vst.msk [vmem:[#allocation2 + $0x8] sm:$0xf] %vm92, %v90
  %v94 = vld [vmem:[%s0 + $0x4] sm:$0xf]
  %96 = vst [vmem:[#allocation1] ss:$2 sm:$0xff] %v94
  %v97 = vld.sshfl [vmem:[#allocation1] sm:$0xff pattern:$0x75316420]
  %98 = vrot.lane.b32.xlu0 %v97, 35
  %v99 = vpop.permute.xlu0 %98
  %vm101 = vcmask 412952
  %102 = vst.msk [vmem:[#allocation2 + $0x8] sm:$0xf] %vm101, %v99
  %v103 = vld [vmem:[%s0 + $0x4] sm:$0xf]
  %105 = vst [vmem:[#allocation1] ss:$2 sm:$0xff] %v103
  %v106 = vld.sshfl [vmem:[#allocation1] sm:$0xff pattern:$0x75316420]
  %107 = vrot.lane.b32.xlu0 %v106, 37
  %v108 = vpop.permute.xlu0 %107
  %vm110 = vcmask 560552
  %111 = vst.msk [vmem:[#allocation2 + $0x8] sm:$0xf] %vm110, %v108
  %v112 = vld [vmem:[%s0 + $0x4] sm:$0xf]
  %114 = vst [vmem:[#allocation1] ss:$2 sm:$0xff] %v112
  %v115 = vld.sshfl [vmem:[#allocation1] sm:$0xff pattern:$0x75316420]
  %116 = vrot.lane.b32.xlu0 %v115, 39
  %v117 = vpop.permute.xlu0 %116
  %vm119 = vcmask 708152
  %120 = vst.msk [vmem:[#allocation2 + $0x8] sm:$0xf] %vm119, %v117
  %v121 = vld [vmem:[%s0 + $0x4] sm:$0xf]
  %123 = vst [vmem:[#allocation1] ss:$2 sm:$0xff] %v121
  %v124 = vld.sshfl [vmem:[#allocation1] sm:$0xff pattern:$0x75316420]
  %125 = vrot.lane.b32.xlu0 %v124, 41
  %v126 = vpop.permute.xlu0 %125
  %vm128 = vcmask 855752
  %129 = vst.msk [vmem:[#allocation2 + $0x8] sm:$0xf] %vm128, %v126
  %v130 = vld [vmem:[%s0 + $0x4] sm:$0xf]
  %132 = vst [vmem:[#allocation1] ss:$2 sm:$0xff] %v130
  %v133 = vld.sshfl [vmem:[#allocation1] sm:$0xff pattern:$0x75316420]
  %134 = vrot.lane.b32.xlu0 %v133, 43
  %v135 = vpop.permute.xlu0 %134
  %vm137 = vcmask 1003352
  %138 = vst.msk [vmem:[#allocation2 + $0x8] sm:$0xf] %vm137, %v135
  %v139 = vld [vmem:[%s0 + $0x4] sm:$0xf]
  %141 = vst [vmem:[#allocation1] ss:$2 sm:$0xff] %v139
  %v142 = vld.sshfl [vmem:[#allocation1] sm:$0xff pattern:$0x75316420]
  %143 = vrot.lane.b32.xlu0 %v142, 45
  %v144 = vpop.permute.xlu0 %143
  %vm146 = vcmask 1044456
  %147 = vst.msk [vmem:[#allocation2 + $0x8] sm:$0xf] %vm146, %v144
  %vm148 = vcmask 101376
  %149 = vst.msk [vmem:[#allocation2 + $0x10] sm:$0xf] %vm148, %v144
  %v150 = vld [vmem:[%s0 + $0x4] sm:$0xf]
  %152 = vst [vmem:[#allocation1] ss:$2 sm:$0xff] %v150
  %v153 = vld.sshfl [vmem:[#allocation1] sm:$0xff pattern:$0x75316420]
  %154 = vrot.lane.b32.xlu0 %v153, 47
  %v155 = vpop.permute.xlu0 %154
  %vm157 = vcmask 248952
  %158 = vst.msk [vmem:[#allocation2 + $0x10] sm:$0xf] %vm157, %v155
  %v159 = vld [vmem:[%s0 + $0x4] sm:$0xf]
  %161 = vst [vmem:[#allocation1] ss:$2 sm:$0xff] %v159
  %v162 = vld.sshfl [vmem:[#allocation1] sm:$0xff pattern:$0x75316420]
  %163 = vrot.lane.b32.xlu0 %v162, 49
  %v164 = vpop.permute.xlu0 %163
  %vm166 = vcmask 396552
  %167 = vst.msk [vmem:[#allocation2 + $0x10] sm:$0xf] %vm166, %v164
  %s168 = scalar_lea.vmem %s0, 8
  %v169 = vld [vmem:[%s168] sm:$0xf]
  %171 = vst [vmem:[#allocation1] ss:$2 sm:$0xff] %v169
  %v172 = vld.sshfl [vmem:[#allocation1] sm:$0xff pattern:$0x75316420]
  %173 = vrot.lane.b32.xlu0 %v172, 19
  %v174 = vpop.permute.xlu0 %173
  %s176 = scalar_lea.vmem [#allocation2], 32
  %177 = vst.msk [vmem:[%s176] sm:$0xf] %vm27, %v174
  %v178 = vld [vmem:[%s168] sm:$0xf]
  %180 = vst [vmem:[#allocation1] ss:$2 sm:$0xff] %v178
  %v181 = vld.sshfl [vmem:[#allocation1] sm:$0xff pattern:$0x75316420]
  %182 = vrot.lane.b32.xlu0 %v181, 21
  %v183 = vpop.permute.xlu0 %182
  %185 = vst.msk [vmem:[%s176] sm:$0xf] %vm36, %v183
  %v186 = vld [vmem:[%s168] sm:$0xf]
  %188 = vst [vmem:[#allocation1] ss:$2 sm:$0xff] %v186
  %v189 = vld.sshfl [vmem:[#allocation1] sm:$0xff pattern:$0x75316420]
  %190 = vrot.lane.b32.xlu0 %v189, 23
  %v191 = vpop.permute.xlu0 %190
  %193 = vst.msk [vmem:[%s176] sm:$0xf] %vm45, %v191
  %v194 = vld [vmem:[%s168] sm:$0xf]
  %196 = vst [vmem:[#allocation1] ss:$2 sm:$0xff] %v194
  %v197 = vld.sshfl [vmem:[#allocation1] sm:$0xff pattern:$0x75316420]
  %198 = vrot.lane.b32.xlu0 %v197, 25
  %v199 = vpop.permute.xlu0 %198
  %201 = vst.msk [vmem:[%s176] sm:$0xf] %vm54, %v199
  %v202 = vld [vmem:[%s168] sm:$0xf]
  %204 = vst [vmem:[#allocation1] ss:$2 sm:$0xff] %v202
  %v205 = vld.sshfl [vmem:[#allocation1] sm:$0xff pattern:$0x75316420]
  %206 = vrot.lane.b32.xlu0 %v205, 27
  %v207 = vpop.permute.xlu0 %206
  %209 = vst.msk [vmem:[%s176] sm:$0xf] %vm63, %v207
  %v210 = vld [vmem:[%s168] sm:$0xf]
  %212 = vst [vmem:[#allocation1] ss:$2 sm:$0xff] %v210
  %v213 = vld.sshfl [vmem:[#allocation1] sm:$0xff pattern:$0x75316420]
  %214 = vrot.lane.b32.xlu0 %v213, 29
  %v215 = vpop.permute.xlu0 %214
  %217 = vst.msk [vmem:[%s176] sm:$0xf] %vm72, %v215
  %v218 = vld [vmem:[%s168] sm:$0xf]
  %220 = vst [vmem:[#allocation1] ss:$2 sm:$0xff] %v218
  %v221 = vld.sshfl [vmem:[#allocation1] sm:$0xff pattern:$0x75316420]
  %222 = vrot.lane.b32.xlu0 %v221, 31
  %v223 = vpop.permute.xlu0 %222
  %225 = vst.msk [vmem:[%s176] sm:$0xf] %vm81, %v223
  %226 = vst.msk [vmem:[%s176 + $0x8] sm:$0xf] %vm83, %v223
  %v227 = vld [vmem:[%s168] sm:$0xf]
  %229 = vst [vmem:[#allocation1] ss:$2 sm:$0xff] %v227
  %v230 = vld.sshfl [vmem:[#allocation1] sm:$0xff pattern:$0x75316420]
  %231 = vrot.lane.b32.xlu0 %v230, 33
  %v232 = vpop.permute.xlu0 %231
  %234 = vst.msk [vmem:[%s176 + $0x8] sm:$0xf] %vm92, %v232
  %v235 = vld [vmem:[%s168 + $0x4] sm:$0xf]
  %237 = vst [vmem:[#allocation1] ss:$2 sm:$0xff] %v235
  %v238 = vld.sshfl [vmem:[#allocation1] sm:$0xff pattern:$0x75316420]
  %239 = vrot.lane.b32.xlu0 %v238, 35
  %v240 = vpop.permute.xlu0 %239
  %242 = vst.msk [vmem:[%s176 + $0x8] sm:$0xf] %vm101, %v240
  %v243 = vld [vmem:[%s168 + $0x4] sm:$0xf]
  %245 = vst [vmem:[#allocation1] ss:$2 sm:$0xff] %v243
  %v246 = vld.sshfl [vmem:[#allocation1] sm:$0xff pattern:$0x75316420]
  %247 = vrot.lane.b32.xlu0 %v246, 37
  %v248 = vpop.permute.xlu0 %247
  %250 = vst.msk [vmem:[%s176 + $0x8] sm:$0xf] %vm110, %v248
  %v251 = vld [vmem:[%s168 + $0x4] sm:$0xf]
  %253 = vst [vmem:[#allocation1] ss:$2 sm:$0xff] %v251
  %v254 = vld.sshfl [vmem:[#allocation1] sm:$0xff pattern:$0x75316420]
  %255 = vrot.lane.b32.xlu0 %v254, 39
  %v256 = vpop.permute.xlu0 %255
  %258 = vst.msk [vmem:[%s176 + $0x8] sm:$0xf] %vm119, %v256
  %v259 = vld [vmem:[%s168 + $0x4] sm:$0xf]
  %261 = vst [vmem:[#allocation1] ss:$2 sm:$0xff] %v259
  %v262 = vld.sshfl [vmem:[#allocation1] sm:$0xff pattern:$0x75316420]
  %263 = vrot.lane.b32.xlu0 %v262, 41
  %v264 = vpop.permute.xlu0 %263
  %266 = vst.msk [vmem:[%s176 + $0x8] sm:$0xf] %vm128, %v264
  %v267 = vld [vmem:[%s168 + $0x4] sm:$0xf]
  %269 = vst [vmem:[#allocation1] ss:$2 sm:$0xff] %v267
  %v270 = vld.sshfl [vmem:[#allocation1] sm:$0xff pattern:$0x75316420]
  %271 = vrot.lane.b32.xlu0 %v270, 43
  %v272 = vpop.permute.xlu0 %271
  %274 = vst.msk [vmem:[%s176 + $0x8] sm:$0xf] %vm137, %v272
  %v275 = vld [vmem:[%s168 + $0x4] sm:$0xf]
  %277 = vst [vmem:[#allocation1] ss:$2 sm:$0xff] %v275
  %v278 = vld.sshfl [vmem:[#allocation1] sm:$0xff pattern:$0x75316420]
  %279 = vrot.lane.b32.xlu0 %v278, 45
  %v280 = vpop.permute.xlu0 %279
  %282 = vst.msk [vmem:[%s176 + $0x8] sm:$0xf] %vm146, %v280
  %283 = vst.msk [vmem:[%s176 + $0x10] sm:$0xf] %vm148, %v280
  %v284 = vld [vmem:[%s168 + $0x4] sm:$0xf]
  %286 = vst [vmem:[#allocation1] ss:$2 sm:$0xff] %v284
  %v287 = vld.sshfl [vmem:[#allocation1] sm:$0xff pattern:$0x75316420]
  %288 = vrot.lane.b32.xlu0 %v287, 47
  %v289 = vpop.permute.xlu0 %288
  %291 = vst.msk [vmem:[%s176 + $0x10] sm:$0xf] %vm157, %v289
  %v292 = vld [vmem:[%s168 + $0x4] sm:$0xf]
  %294 = vst [vmem:[#allocation1] ss:$2 sm:$0xff] %v292
  %v295 = vld.sshfl [vmem:[#allocation1] sm:$0xff pattern:$0x75316420]
  %296 = vrot.lane.b32.xlu0 %v295, 49
  %v297 = vpop.permute.xlu0 %296
  %299 = vst.msk [vmem:[%s176 + $0x10] sm:$0xf] %vm166, %v297
  %v300 = vld [vmem:[#allocation2] sm:$0xff]
  %v301 = vld [vmem:[#allocation2 + $0x8] sm:$0xff]
  %v302 = vld [vmem:[#allocation2 + $0x10] sm:$0xff]
  %303 = vst [vmem:[#allocation3] sm:$0xff] %v300
  %304 = vst [vmem:[#allocation3 + $0x8] sm:$0xff] %v301
  %305 = vst [vmem:[#allocation3 + $0x10] sm:$0xff] %v302
  %v306 = vld [vmem:[#allocation2] sm:$0xff]
  %v307 = vld [vmem:[#allocation2 + $0x8] sm:$0xff]
  %v308 = vld [vmem:[#allocation2 + $0x10] sm:$0xff]
  %v309 = vld [vmem:[#allocation2 + $0x18] sm:$0xff]
  %314 = vrot.lane.b32.xlu0 %v306, 127
  %v315 = vpop.permute.xlu0 %314
  %316 = vrot.lane.b32.xlu0 %v307, 127
  %v317 = vpop.permute.xlu0 %316
  %318 = vrot.lane.b32.xlu0 %v308, 127
  %v319 = vpop.permute.xlu0 %318
  %320 = vrot.lane.b32.xlu0 %v309, 127
  %v321 = vpop.permute.xlu0 %320
  %vm322 = vcmask 1039360
  %v323 = vsel %vm322, %v315, %v317
  %v324 = vsel %vm322, %v317, %v319
  %v325 = vsel %vm322, %v319, %v321
  %329 = vst [vmem:[#allocation3 + $0x30] sm:$0xff] %v323
  %330 = vst [vmem:[#allocation3 + $0x38] sm:$0xff] %v324
  %331 = vst [vmem:[#allocation3 + $0x40] sm:$0xff] %v325
  %v332 = vld [vmem:[#allocation2] sm:$0xff]
  %v333 = vld [vmem:[#allocation2 + $0x8] sm:$0xff]
  %v334 = vld [vmem:[#allocation2 + $0x10] sm:$0xff]
  %v335 = vld [vmem:[#allocation2 + $0x18] sm:$0xff]
  %340 = vrot.lane.b32.xlu0 %v332, 126
  %v341 = vpop.permute.xlu0 %340
  %342 = vrot.lane.b32.xlu0 %v333, 126
  %v343 = vpop.permute.xlu0 %342
  %344 = vrot.lane.b32.xlu0 %v334, 126
  %v345 = vpop.permute.xlu0 %344
  %346 = vrot.lane.b32.xlu0 %v335, 126
  %v347 = vpop.permute.xlu0 %346
  %vm348 = vcmask 1031168
  %v349 = vsel %vm348, %v341, %v343
  %v350 = vsel %vm348, %v343, %v345
  %v351 = vsel %vm348, %v345, %v347
  %355 = vst [vmem:[#allocation3 + $0x60] sm:$0xff] %v349
  %356 = vst [vmem:[#allocation3 + $0x68] sm:$0xff] %v350
  %357 = vst [vmem:[#allocation3 + $0x70] sm:$0xff] %v351
  %v358 = vld [vmem:[#allocation2] sm:$0xff]
  %v359 = vld [vmem:[#allocation2 + $0x8] sm:$0xff]
  %v360 = vld [vmem:[#allocation2 + $0x10] sm:$0xff]
  %v361 = vld [vmem:[#allocation2 + $0x18] sm:$0xff]
  %366 = vrot.lane.b32.xlu0 %v358, 110
  %v367 = vpop.permute.xlu0 %366
  %368 = vrot.lane.b32.xlu0 %v359, 110
  %v369 = vpop.permute.xlu0 %368
  %370 = vrot.lane.b32.xlu0 %v360, 110
  %v371 = vpop.permute.xlu0 %370
  %372 = vrot.lane.b32.xlu0 %v361, 110
  %v373 = vpop.permute.xlu0 %372
  %vm374 = vcmask 900096
  %v375 = vsel %vm374, %v367, %v369
  %v376 = vsel %vm374, %v369, %v371
  %v377 = vsel %vm374, %v371, %v373
  %381 = vst [vmem:[#allocation3 + $0x90] sm:$0xff] %v375
  %382 = vst [vmem:[#allocation3 + $0x98] sm:$0xff] %v376
  %383 = vst [vmem:[#allocation3 + $0xa0] sm:$0xff] %v377
  %v384 = vld [vmem:[#allocation2] sm:$0xff]
  %v385 = vld [vmem:[#allocation2 + $0x8] sm:$0xff]
  %v386 = vld [vmem:[#allocation2 + $0x10] sm:$0xff]
  %v387 = vld [vmem:[#allocation2 + $0x18] sm:$0xff]
  %392 = vrot.lane.b32.xlu0 %v384, 109
  %v393 = vpop.permute.xlu0 %392
  %394 = vrot.lane.b32.xlu0 %v385, 109
  %v395 = vpop.permute.xlu0 %394
  %396 = vrot.lane.b32.xlu0 %v386, 109
  %v397 = vpop.permute.xlu0 %396
  %398 = vrot.lane.b32.xlu0 %v387, 109
  %v399 = vpop.permute.xlu0 %398
  %vm400 = vcmask 891904
  %v401 = vsel %vm400, %v393, %v395
  %v402 = vsel %vm400, %v395, %v397
  %v403 = vsel %vm400, %v397, %v399
  %407 = vst [vmem:[#allocation3 + $0xc0] sm:$0xff] %v401
  %408 = vst [vmem:[#allocation3 + $0xc8] sm:$0xff] %v402
  %409 = vst [vmem:[#allocation3 + $0xd0] sm:$0xff] %v403
  %v410 = vld [vmem:[#allocation2] sm:$0xff]
  %v411 = vld [vmem:[#allocation2 + $0x8] sm:$0xff]
  %v412 = vld [vmem:[#allocation2 + $0x10] sm:$0xff]
  %v413 = vld [vmem:[#allocation2 + $0x18] sm:$0xff]
  %418 = vrot.lane.b32.xlu0 %v410, 108
  %v419 = vpop.permute.xlu0 %418
  %420 = vrot.lane.b32.xlu0 %v411, 108
  %v421 = vpop.permute.xlu0 %420
  %422 = vrot.lane.b32.xlu0 %v412, 108
  %v423 = vpop.permute.xlu0 %422
  %424 = vrot.lane.b32.xlu0 %v413, 108
  %v425 = vpop.permute.xlu0 %424
  %vm426 = vcmask 883712
  %v427 = vsel %vm426, %v419, %v421
  %v428 = vsel %vm426, %v421, %v423
  %v429 = vsel %vm426, %v423, %v425
  %433 = vst [vmem:[#allocation3 + $0xf0] sm:$0xff] %v427
  %434 = vst [vmem:[#allocation3 + $0xf8] sm:$0xff] %v428
  %435 = vst [vmem:[#allocation3 + $0x100] sm:$0xff] %v429
  %v436 = vld [vmem:[#allocation2] sm:$0xff]
  %v437 = vld [vmem:[#allocation2 + $0x8] sm:$0xff]
  %v438 = vld [vmem:[#allocation2 + $0x10] sm:$0xff]
  %v439 = vld [vmem:[#allocation2 + $0x18] sm:$0xff]
  %444 = vrot.lane.b32.xlu0 %v436, 92
  %v445 = vpop.permute.xlu0 %444
  %446 = vrot.lane.b32.xlu0 %v437, 92
  %v447 = vpop.permute.xlu0 %446
  %448 = vrot.lane.b32.xlu0 %v438, 92
  %v449 = vpop.permute.xlu0 %448
  %450 = vrot.lane.b32.xlu0 %v439, 92
  %v451 = vpop.permute.xlu0 %450
  %vm452 = vcmask 752640
  %v453 = vsel %vm452, %v445, %v447
  %v454 = vsel %vm452, %v447, %v449
  %v455 = vsel %vm452, %v449, %v451
  %459 = vst [vmem:[#allocation3 + $0x120] sm:$0xff] %v453
  %460 = vst [vmem:[#allocation3 + $0x128] sm:$0xff] %v454
  %461 = vst [vmem:[#allocation3 + $0x130] sm:$0xff] %v455
  %v462 = vld [vmem:[#allocation2] sm:$0xff]
  %v463 = vld [vmem:[#allocation2 + $0x8] sm:$0xff]
  %v464 = vld [vmem:[#allocation2 + $0x10] sm:$0xff]
  %v465 = vld [vmem:[#allocation2 + $0x18] sm:$0xff]
  %470 = vrot.lane.b32.xlu0 %v462, 91
  %v471 = vpop.permute.xlu0 %470
  %472 = vrot.lane.b32.xlu0 %v463, 91
  %v473 = vpop.permute.xlu0 %472
  %474 = vrot.lane.b32.xlu0 %v464, 91
  %v475 = vpop.permute.xlu0 %474
  %476 = vrot.lane.b32.xlu0 %v465, 91
  %v477 = vpop.permute.xlu0 %476
  %vm478 = vcmask 744448
  %v479 = vsel %vm478, %v471, %v473
  %v480 = vsel %vm478, %v473, %v475
  %v481 = vsel %vm478, %v475, %v477
  %485 = vst [vmem:[#allocation3 + $0x150] sm:$0xff] %v479
  %486 = vst [vmem:[#allocation3 + $0x158] sm:$0xff] %v480
  %487 = vst [vmem:[#allocation3 + $0x160] sm:$0xff] %v481
  %v488 = vld [vmem:[#allocation2] sm:$0xff]
  %v489 = vld [vmem:[#allocation2 + $0x8] sm:$0xff]
  %v490 = vld [vmem:[#allocation2 + $0x10] sm:$0xff]
  %v491 = vld [vmem:[#allocation2 + $0x18] sm:$0xff]
  %496 = vrot.lane.b32.xlu0 %v488, 90
  %v497 = vpop.permute.xlu0 %496
  %498 = vrot.lane.b32.xlu0 %v489, 90
  %v499 = vpop.permute.xlu0 %498
  %500 = vrot.lane.b32.xlu0 %v490, 90
  %v501 = vpop.permute.xlu0 %500
  %502 = vrot.lane.b32.xlu0 %v491, 90
  %v503 = vpop.permute.xlu0 %502
  %vm504 = vcmask 736256
  %v505 = vsel %vm504, %v497, %v499
  %v506 = vsel %vm504, %v499, %v501
  %v507 = vsel %vm504, %v501, %v503
  %511 = vst [vmem:[#allocation3 + $0x180] sm:$0xff] %v505
  %512 = vst [vmem:[#allocation3 + $0x188] sm:$0xff] %v506
  %513 = vst [vmem:[#allocation3 + $0x190] sm:$0xff] %v507
  %v514 = vld [vmem:[%s176] sm:$0xff]
  %v515 = vld [vmem:[%s176 + $0x8] sm:$0xff]
  %v516 = vld [vmem:[%s176 + $0x10] sm:$0xff]
  %517 = vst [vmem:[#allocation3 + $0x18] sm:$0xff] %v514
  %518 = vst [vmem:[#allocation3 + $0x20] sm:$0xff] %v515
  %519 = vst [vmem:[#allocation3 + $0x28] sm:$0xff] %v516
  %v520 = vld [vmem:[%s176] sm:$0xff]
  %v521 = vld [vmem:[%s176 + $0x8] sm:$0xff]
  %v522 = vld [vmem:[%s176 + $0x10] sm:$0xff]
  %v523 = vld [vmem:[%s176 + $0x18] sm:$0xff]
  %528 = vrot.lane.b32.xlu0 %v520, 127
  %v529 = vpop.permute.xlu0 %528
  %530 = vrot.lane.b32.xlu0 %v521, 127
  %v531 = vpop.permute.xlu0 %530
  %532 = vrot.lane.b32.xlu0 %v522, 127
  %v533 = vpop.permute.xlu0 %532
  %534 = vrot.lane.b32.xlu0 %v523, 127
  %v535 = vpop.permute.xlu0 %534
  %v536 = vsel %vm322, %v529, %v531
  %v537 = vsel %vm322, %v531, %v533
  %v538 = vsel %vm322, %v533, %v535
  %542 = vst [vmem:[#allocation3 + $0x48] sm:$0xff] %v536
  %543 = vst [vmem:[#allocation3 + $0x50] sm:$0xff] %v537
  %544 = vst [vmem:[#allocation3 + $0x58] sm:$0xff] %v538
  %v545 = vld [vmem:[%s176] sm:$0xff]
  %v546 = vld [vmem:[%s176 + $0x8] sm:$0xff]
  %v547 = vld [vmem:[%s176 + $0x10] sm:$0xff]
  %v548 = vld [vmem:[%s176 + $0x18] sm:$0xff]
  %553 = vrot.lane.b32.xlu0 %v545, 126
  %v554 = vpop.permute.xlu0 %553
  %555 = vrot.lane.b32.xlu0 %v546, 126
  %v556 = vpop.permute.xlu0 %555
  %557 = vrot.lane.b32.xlu0 %v547, 126
  %v558 = vpop.permute.xlu0 %557
  %559 = vrot.lane.b32.xlu0 %v548, 126
  %v560 = vpop.permute.xlu0 %559
  %v561 = vsel %vm348, %v554, %v556
  %v562 = vsel %vm348, %v556, %v558
  %v563 = vsel %vm348, %v558, %v560
  %567 = vst [vmem:[#allocation3 + $0x78] sm:$0xff] %v561
  %568 = vst [vmem:[#allocation3 + $0x80] sm:$0xff] %v562
  %569 = vst [vmem:[#allocation3 + $0x88] sm:$0xff] %v563
  %v570 = vld [vmem:[%s176] sm:$0xff]
  %v571 = vld [vmem:[%s176 + $0x8] sm:$0xff]
  %v572 = vld [vmem:[%s176 + $0x10] sm:$0xff]
  %v573 = vld [vmem:[%s176 + $0x18] sm:$0xff]
  %578 = vrot.lane.b32.xlu0 %v570, 110
  %v579 = vpop.permute.xlu0 %578
  %580 = vrot.lane.b32.xlu0 %v571, 110
  %v581 = vpop.permute.xlu0 %580
  %582 = vrot.lane.b32.xlu0 %v572, 110
  %v583 = vpop.permute.xlu0 %582
  %584 = vrot.lane.b32.xlu0 %v573, 110
  %v585 = vpop.permute.xlu0 %584
  %v586 = vsel %vm374, %v579, %v581
  %v587 = vsel %vm374, %v581, %v583
  %v588 = vsel %vm374, %v583, %v585
  %592 = vst [vmem:[#allocation3 + $0xa8] sm:$0xff] %v586
  %593 = vst [vmem:[#allocation3 + $0xb0] sm:$0xff] %v587
  %594 = vst [vmem:[#allocation3 + $0xb8] sm:$0xff] %v588
  %v595 = vld [vmem:[%s176] sm:$0xff]
  %v596 = vld [vmem:[%s176 + $0x8] sm:$0xff]
  %v597 = vld [vmem:[%s176 + $0x10] sm:$0xff]
  %v598 = vld [vmem:[%s176 + $0x18] sm:$0xff]
  %603 = vrot.lane.b32.xlu0 %v595, 109
  %v604 = vpop.permute.xlu0 %603
  %605 = vrot.lane.b32.xlu0 %v596, 109
  %v606 = vpop.permute.xlu0 %605
  %607 = vrot.lane.b32.xlu0 %v597, 109
  %v608 = vpop.permute.xlu0 %607
  %609 = vrot.lane.b32.xlu0 %v598, 109
  %v610 = vpop.permute.xlu0 %609
  %v611 = vsel %vm400, %v604, %v606
  %v612 = vsel %vm400, %v606, %v608
  %v613 = vsel %vm400, %v608, %v610
  %617 = vst [vmem:[#allocation3 + $0xd8] sm:$0xff] %v611
  %618 = vst [vmem:[#allocation3 + $0xe0] sm:$0xff] %v612
  %619 = vst [vmem:[#allocation3 + $0xe8] sm:$0xff] %v613
  %v620 = vld [vmem:[%s176] sm:$0xff]
  %v621 = vld [vmem:[%s176 + $0x8] sm:$0xff]
  %v622 = vld [vmem:[%s176 + $0x10] sm:$0xff]
  %v623 = vld [vmem:[%s176 + $0x18] sm:$0xff]
  %628 = vrot.lane.b32.xlu0 %v620, 108
  %v629 = vpop.permute.xlu0 %628
  %630 = vrot.lane.b32.xlu0 %v621, 108
  %v631 = vpop.permute.xlu0 %630
  %632 = vrot.lane.b32.xlu0 %v622, 108
  %v633 = vpop.permute.xlu0 %632
  %634 = vrot.lane.b32.xlu0 %v623, 108
  %v635 = vpop.permute.xlu0 %634
  %v636 = vsel %vm426, %v629, %v631
  %v637 = vsel %vm426, %v631, %v633
  %v638 = vsel %vm426, %v633, %v635
  %642 = vst [vmem:[#allocation3 + $0x108] sm:$0xff] %v636
  %643 = vst [vmem:[#allocation3 + $0x110] sm:$0xff] %v637
  %644 = vst [vmem:[#allocation3 + $0x118] sm:$0xff] %v638
  %v645 = vld [vmem:[%s176] sm:$0xff]
  %v646 = vld [vmem:[%s176 + $0x8] sm:$0xff]
  %v647 = vld [vmem:[%s176 + $0x10] sm:$0xff]
  %v648 = vld [vmem:[%s176 + $0x18] sm:$0xff]
  %653 = vrot.lane.b32.xlu0 %v645, 92
  %v654 = vpop.permute.xlu0 %653
  %655 = vrot.lane.b32.xlu0 %v646, 92
  %v656 = vpop.permute.xlu0 %655
  %657 = vrot.lane.b32.xlu0 %v647, 92
  %v658 = vpop.permute.xlu0 %657
  %659 = vrot.lane.b32.xlu0 %v648, 92
  %v660 = vpop.permute.xlu0 %659
  %v661 = vsel %vm452, %v654, %v656
  %v662 = vsel %vm452, %v656, %v658
  %v663 = vsel %vm452, %v658, %v660
  %667 = vst [vmem:[#allocation3 + $0x138] sm:$0xff] %v661
  %668 = vst [vmem:[#allocation3 + $0x140] sm:$0xff] %v662
  %669 = vst [vmem:[#allocation3 + $0x148] sm:$0xff] %v663
  %v670 = vld [vmem:[%s176] sm:$0xff]
  %v671 = vld [vmem:[%s176 + $0x8] sm:$0xff]
  %v672 = vld [vmem:[%s176 + $0x10] sm:$0xff]
  %v673 = vld [vmem:[%s176 + $0x18] sm:$0xff]
  %678 = vrot.lane.b32.xlu0 %v670, 91
  %v679 = vpop.permute.xlu0 %678
  %680 = vrot.lane.b32.xlu0 %v671, 91
  %v681 = vpop.permute.xlu0 %680
  %682 = vrot.lane.b32.xlu0 %v672, 91
  %v683 = vpop.permute.xlu0 %682
  %684 = vrot.lane.b32.xlu0 %v673, 91
  %v685 = vpop.permute.xlu0 %684
  %v686 = vsel %vm478, %v679, %v681
  %v687 = vsel %vm478, %v681, %v683
  %v688 = vsel %vm478, %v683, %v685
  %692 = vst [vmem:[#allocation3 + $0x168] sm:$0xff] %v686
  %693 = vst [vmem:[#allocation3 + $0x170] sm:$0xff] %v687
  %694 = vst [vmem:[#allocation3 + $0x178] sm:$0xff] %v688
  %v695 = vld [vmem:[%s176] sm:$0xff]
  %v696 = vld [vmem:[%s176 + $0x8] sm:$0xff]
  %v697 = vld [vmem:[%s176 + $0x10] sm:$0xff]
  %v698 = vld [vmem:[%s176 + $0x18] sm:$0xff]
  %703 = vrot.lane.b32.xlu0 %v695, 90
  %v704 = vpop.permute.xlu0 %703
  %705 = vrot.lane.b32.xlu0 %v696, 90
  %v706 = vpop.permute.xlu0 %705
  %707 = vrot.lane.b32.xlu0 %v697, 90
  %v708 = vpop.permute.xlu0 %707
  %709 = vrot.lane.b32.xlu0 %v698, 90
  %v710 = vpop.permute.xlu0 %709
  %v711 = vsel %vm504, %v704, %v706
  %v712 = vsel %vm504, %v706, %v708
  %v713 = vsel %vm504, %v708, %v710
  %717 = vst [vmem:[#allocation3 + $0x198] sm:$0xff] %v711
  %718 = vst [vmem:[#allocation3 + $0x1a0] sm:$0xff] %v712
  %719 = vst [vmem:[#allocation3 + $0x1a8] sm:$0xff] %v713
  %v720 = vld [vmem:[%s1] sm:$0xff]
  %v721 = vld [vmem:[#allocation3] sm:$0xff]
  %v722 = vld [vmem:[#allocation3 + $0x8] sm:$0xff]
  %v723 = vld [vmem:[#allocation3 + $0x10] sm:$0xff]
  %v724 = vld [vmem:[#allocation3 + $0x18] sm:$0xff]
  %v725 = vld [vmem:[#allocation3 + $0x20] sm:$0xff]
  %v726 = vld [vmem:[#allocation3 + $0x28] sm:$0xff]
  %v727 = vld [vmem:[#allocation3 + $0x30] sm:$0xff]
  %v728 = vld [vmem:[#allocation3 + $0x38] sm:$0xff]
  %v729 = vld [vmem:[#allocation3 + $0x40] sm:$0xff]
  %v730 = vld [vmem:[#allocation3 + $0x48] sm:$0xff]
  %v731 = vld [vmem:[#allocation3 + $0x50] sm:$0xff]
  %v732 = vld [vmem:[#allocation3 + $0x58] sm:$0xff]
  %v733 = vld [vmem:[#allocation3 + $0x60] sm:$0xff]
  %v734 = vld [vmem:[#allocation3 + $0x68] sm:$0xff]
  %v735 = vld [vmem:[#allocation3 + $0x70] sm:$0xff]
  %v736 = vld [vmem:[#allocation3 + $0x78] sm:$0xff]
  %v737 = vld [vmem:[#allocation3 + $0x80] sm:$0xff]
  %v738 = vld [vmem:[#allocation3 + $0x88] sm:$0xff]
  %v739 = vld [vmem:[#allocation3 + $0x90] sm:$0xff]
  %v740 = vld [vmem:[#allocation3 + $0x98] sm:$0xff]
  %v741 = vld [vmem:[#allocation3 + $0xa0] sm:$0xff]
  %v742 = vld [vmem:[#allocation3 + $0xa8] sm:$0xff]
  %v743 = vld [vmem:[#allocation3 + $0xb0] sm:$0xff]
  %v744 = vld [vmem:[#allocation3 + $0xb8] sm:$0xff]
  %v745 = vld [vmem:[#allocation3 + $0xc0] sm:$0xff]
  %v746 = vld [vmem:[#allocation3 + $0xc8] sm:$0xff]
  %v747 = vld [vmem:[#allocation3 + $0xd0] sm:$0xff]
  %v748 = vld [vmem:[#allocation3 + $0xd8] sm:$0xff]
  %v749 = vld [vmem:[#allocation3 + $0xe0] sm:$0xff]
  %v750 = vld [vmem:[#allocation3 + $0xe8] sm:$0xff]
  %v751 = vld [vmem:[#allocation3 + $0xf0] sm:$0xff]
  %v752 = vld [vmem:[#allocation3 + $0xf8] sm:$0xff]
  %v753 = vld [vmem:[#allocation3 + $0x100] sm:$0xff]
  %v754 = vld [vmem:[#allocation3 + $0x108] sm:$0xff]
  %v755 = vld [vmem:[#allocation3 + $0x110] sm:$0xff]
  %v756 = vld [vmem:[#allocation3 + $0x118] sm:$0xff]
  %v757 = vld [vmem:[#allocation3 + $0x120] sm:$0xff]
  %v758 = vld [vmem:[#allocation3 + $0x128] sm:$0xff]
  %v759 = vld [vmem:[#allocation3 + $0x130] sm:$0xff]
  %v760 = vld [vmem:[#allocation3 + $0x138] sm:$0xff]
  %v761 = vld [vmem:[#allocation3 + $0x140] sm:$0xff]
  %v762 = vld [vmem:[#allocation3 + $0x148] sm:$0xff]
  %v763 = vld [vmem:[#allocation3 + $0x150] sm:$0xff]
  %v764 = vld [vmem:[#allocation3 + $0x158] sm:$0xff]
  %v765 = vld [vmem:[#allocation3 + $0x160] sm:$0xff]
  %v766 = vld [vmem:[#allocation3 + $0x168] sm:$0xff]
  %v767 = vld [vmem:[#allocation3 + $0x170] sm:$0xff]
  %v768 = vld [vmem:[#allocation3 + $0x178] sm:$0xff]
  %v769 = vld [vmem:[#allocation3 + $0x180] sm:$0xff]
  %v770 = vld [vmem:[#allocation3 + $0x188] sm:$0xff]
  %v771 = vld [vmem:[#allocation3 + $0x190] sm:$0xff]
  %v772 = vld [vmem:[#allocation3 + $0x198] sm:$0xff]
  %v773 = vld [vmem:[#allocation3 + $0x1a0] sm:$0xff]
  %v774 = vld [vmem:[#allocation3 + $0x1a8] sm:$0xff]
  %vm775 = vcmask 588800
  %v777 = vsel %vm775, %v720, 0
  %779 = vmatpush.msra.mxu0 0.0
  %780 = vmatpush.msra.mxu0 0.0
  %781 = vmatpush.msra.mxu0 0.0
  %782 = vmatpush.msra.mxu0 0.0
  %783 = vmatpush.msra.mxu0 0.0
  %784 = vmatpush.msra.mxu0 0.0
  %785 = vmatpush.msra.mxu0 0.0
  %786 = vmatpush.msra.mxu0 %v769
  %787 = vmatpush.msra.mxu0 %v763
  %788 = vmatpush.msra.mxu0 %v757
  %789 = vmatpush.msra.mxu0 %v751
  %790 = vmatpush.msra.mxu0 %v745
  %791 = vmatpush.msra.mxu0 %v739
  %792 = vmatpush.msra.mxu0 %v733
  %793 = vmatpush.msra.mxu0 %v727
  %794 = vmatpush.msra.mxu0 %v721
  %795 = vmatmul.f32.gmra.mxu0 %v777
  %v796 = vpop.f32.mrf.mxu0
  %v797 = vadd.f32 0.0, %v796
  %798 = vdwg.mxu0
  %799 = vmatpush.msra.mxu0 0.0
  %800 = vmatpush.msra.mxu0 0.0
  %801 = vmatpush.msra.mxu0 0.0
  %802 = vmatpush.msra.mxu0 0.0
  %803 = vmatpush.msra.mxu0 0.0
  %804 = vmatpush.msra.mxu0 0.0
  %805 = vmatpush.msra.mxu0 0.0
  %806 = vmatpush.msra.mxu0 %v770
  %807 = vmatpush.msra.mxu0 %v764
  %808 = vmatpush.msra.mxu0 %v758
  %809 = vmatpush.msra.mxu0 %v752
  %810 = vmatpush.msra.mxu0 %v746
  %811 = vmatpush.msra.mxu0 %v740
  %812 = vmatpush.msra.mxu0 %v734
  %813 = vmatpush.msra.mxu0 %v728
  %814 = vmatpush.msra.mxu0 %v722
  %815 = vmatmul.f32.gmra.mxu0 %v777
  %v816 = vpop.f32.mrf.mxu0
  %v817 = vadd.f32 0.0, %v816
  %818 = vdwg.mxu0
  %819 = vmatpush.msra.mxu0 0.0
  %820 = vmatpush.msra.mxu0 0.0
  %821 = vmatpush.msra.mxu0 0.0
  %822 = vmatpush.msra.mxu0 0.0
  %823 = vmatpush.msra.mxu0 0.0
  %824 = vmatpush.msra.mxu0 0.0
  %825 = vmatpush.msra.mxu0 0.0
  %826 = vmatpush.msra.mxu0 %v771
  %827 = vmatpush.msra.mxu0 %v765
  %828 = vmatpush.msra.mxu0 %v759
  %829 = vmatpush.msra.mxu0 %v753
  %830 = vmatpush.msra.mxu0 %v747
  %831 = vmatpush.msra.mxu0 %v741
  %832 = vmatpush.msra.mxu0 %v735
  %833 = vmatpush.msra.mxu0 %v729
  %834 = vmatpush.msra.mxu0 %v723
  %835 = vmatmul.f32.gmra.mxu0 %v777
  %v836 = vpop.f32.mrf.mxu0
  %v837 = vadd.f32 0.0, %v836
  %838 = vdwg.mxu0
  %839 = vmatpush.msra.mxu0 0.0
  %840 = vmatpush.msra.mxu0 0.0
  %841 = vmatpush.msra.mxu0 0.0
  %842 = vmatpush.msra.mxu0 0.0
  %843 = vmatpush.msra.mxu0 0.0
  %844 = vmatpush.msra.mxu0 0.0
  %845 = vmatpush.msra.mxu0 0.0
  %846 = vmatpush.msra.mxu0 %v772
  %847 = vmatpush.msra.mxu0 %v766
  %848 = vmatpush.msra.mxu0 %v760
  %849 = vmatpush.msra.mxu0 %v754
  %850 = vmatpush.msra.mxu0 %v748
  %851 = vmatpush.msra.mxu0 %v742
  %852 = vmatpush.msra.mxu0 %v736
  %853 = vmatpush.msra.mxu0 %v730
  %854 = vmatpush.msra.mxu0 %v724
  %855 = vmatmul.f32.gmra.mxu0 %v777
  %v856 = vpop.f32.mrf.mxu0
  %v857 = vadd.f32 0.0, %v856
  %858 = vdwg.mxu0
  %859 = vmatpush.msra.mxu0 0.0
  %860 = vmatpush.msra.mxu0 0.0
  %861 = vmatpush.msra.mxu0 0.0
  %862 = vmatpush.msra.mxu0 0.0
  %863 = vmatpush.msra.mxu0 0.0
  %864 = vmatpush.msra.mxu0 0.0
  %865 = vmatpush.msra.mxu0 0.0
  %866 = vmatpush.msra.mxu0 %v773
  %867 = vmatpush.msra.mxu0 %v767
  %868 = vmatpush.msra.mxu0 %v761
  %869 = vmatpush.msra.mxu0 %v755
  %870 = vmatpush.msra.mxu0 %v749
  %871 = vmatpush.msra.mxu0 %v743
  %872 = vmatpush.msra.mxu0 %v737
  %873 = vmatpush.msra.mxu0 %v731
  %874 = vmatpush.msra.mxu0 %v725
  %875 = vmatmul.f32.gmra.mxu0 %v777
  %v876 = vpop.f32.mrf.mxu0
  %v877 = vadd.f32 0.0, %v876
  %878 = vdwg.mxu0
  %879 = vmatpush.msra.mxu0 0.0
  %880 = vmatpush.msra.mxu0 0.0
  %881 = vmatpush.msra.mxu0 0.0
  %882 = vmatpush.msra.mxu0 0.0
  %883 = vmatpush.msra.mxu0 0.0
  %884 = vmatpush.msra.mxu0 0.0
  %885 = vmatpush.msra.mxu0 0.0
  %886 = vmatpush.msra.mxu0 %v774
  %887 = vmatpush.msra.mxu0 %v768
  %888 = vmatpush.msra.mxu0 %v762
  %889 = vmatpush.msra.mxu0 %v756
  %890 = vmatpush.msra.mxu0 %v750
  %891 = vmatpush.msra.mxu0 %v744
  %892 = vmatpush.msra.mxu0 %v738
  %893 = vmatpush.msra.mxu0 %v732
  %894 = vmatpush.msra.mxu0 %v726
  %895 = vmatmul.f32.gmra.mxu0 %v777
  %v896 = vpop.f32.mrf.mxu0
  %v897 = vadd.f32 0.0, %v896
  %898 = vdwg.mxu0
  %v899 = vmax.f32 %v797, 0.0
  %v900 = vmax.f32 %v817, 0.0
  %v901 = vmax.f32 %v837, 0.0
  %v902 = vmax.f32 %v857, 0.0
  %v903 = vmax.f32 %v877, 0.0
  %v904 = vmax.f32 %v897, 0.0
  %905 = vst [vmem:[%s2] sm:$0xff] %v899
  %906 = vst [vmem:[%s2 + $0x8] sm:$0xff] %v900
  %907 = vst [vmem:[%s2 + $0x10] sm:$0xff] %v901
  %s908 = scalar_lea.vmem %s2, 24
  %909 = vst [vmem:[%s908] sm:$0xff] %v902
  %910 = vst [vmem:[%s908 + $0x8] sm:$0xff] %v903
  %911 = vst [vmem:[%s908 + $0x10] sm:$0xff] %v904
  // Predicated region
  $region10: #{basic_conv2d.1} parent=0 // pred_check
    _
  $region11: #{basic_conv2d.1} parent=0 // pred_check_branch
    %913 = sbr.rel (0) target = $region13
  $region12: #{basic_conv2d.1} parent=0 // pred_region
    _
  $region13: #{basic_conv2d.1} parent=0 // pred_fallthru
    _
  // Predicated region
  $region14: #{basic_conv2d.1} parent=0 // pred_check
    _
  $region15: #{basic_conv2d.1} parent=0 // pred_check_branch
    %915 = sbr.rel (0) target = $region17
  $region16: #{basic_conv2d.1} parent=0 // pred_region
    _
  $region17: #{basic_conv2d.1} parent=0 // pred_fallthru
    _

</llo_original>
